<compile_context>
chip_gen: v7x
topology: tpu7x:2x2x1
jax: 0.10.0
libtpu: 0.0.40
codegen_flags: <defaults>
</compile_context>

<pallas_src>
import jax
import jax.numpy as jnp
from jax import lax
from jax.experimental import pallas as pl
from jax.experimental.pallas import tpu as pltpu

EPS = 1e-6  # matches GeM(eps=1e-6)


def _cdiv(a, b):
    return -(-a // b)


def _round_up(a, b):
    return _cdiv(a, b) * b


def _choose_pack(nc, hw):
    """Pick k (a divisor of nc) packing k channel rows onto the lane axis.

    Goal: lane width k*hw >= 512 and as close to a multiple of 128 as possible,
    so the VPU/EUP work per vreg is not wasted on padding lanes.  k == 1 falls
    back to the plain (proven) mean-over-lanes path.
    """
    if hw <= 0:
        return 1
    if hw >= 512 and hw % 128 == 0:
        return 1                      # already wide and lane-dense
    best_k, best_score = 1, (-1.0, -1)
    k = 1
    while k <= min(nc, 32) and k * hw <= 2048:
        if nc % k == 0:
            w = k * hw
            util = w / _round_up(w, 128)
            wide = 1.0 if w >= 512 else 0.0
            score = (wide + util, k)
            if score > best_score:
                best_k, best_score = k, score
        k += 1
    return best_k


def _choose_row_tile(rows, width, sub, vmem_limit):
    """Row-tile size from an f32-equivalent VMEM budget (temporaries dominate)."""
    lane_w = _round_up(max(width, 1), 128)
    budget_bytes = min(8 * 1024 * 1024, vmem_limit // 6)
    tr = max(budget_bytes // (lane_w * 4), sub)
    tr = min(tr, 4096)
    # Keep >= ~8 grid steps when rows allow: full double-buffered pipeline and
    # >= 2 steps per TensorCore on v7x with dimension_semantics=("parallel",).
    tr = min(tr, _round_up(_cdiv(rows, 8), sub))
    tr = min(tr, _round_up(rows, sub))
    if tr >= 128:
        tr = (tr // 128) * 128
    else:
        tr = (tr // sub) * sub
    return max(int(tr), sub)


def _make_gem_kernel(k, hw):
    w = k * hw

    def kernel(p_ref, x_ref, o_ref):
        # p_ref: (1,) f32 in SMEM
        # x_ref: (tr, k*hw) block in VMEM (k packed channel rows per slab row)
        # o_ref: (1, 1, tr) if k == 1 else (1, tr, k)
        p = p_ref[0]
        inv_p = 1.0 / p

        x = jnp.maximum(x_ref[...].astype(jnp.float32), EPS)   # clamp(min=eps)
        xp = jnp.exp(p * jnp.log(x))                            # x ** p (EUP)

        if k == 1:
            # Full-extent mean over the lane axis; Mosaic masks padding lanes.
            mean = jnp.mean(xp, axis=-1)                         # (tr,)
            y = jnp.exp(jnp.log(mean) * inv_p)                   # mean ** (1/p)
            o_ref[...] = y.reshape(o_ref.shape).astype(o_ref.dtype)
        else:
            # Scrub NaN/Inf (undefined tail rows / padding lanes).  Elementwise
            # ops act on whole vregs, so this also zeroes garbage padding lanes;
            # together with Mosaic's masking of the padded contraction region the
            # segmented matmul below stays clean.  (Real data is finite: x>=eps.)
            xp = jnp.where(xp < jnp.float32(3.0e38), xp, 0.0)

            # Block-diagonal 0/1 segment matrix (w, k): column c selects lanes
            # [c*hw, (c+1)*hw).  Tiny (<= 2048 x 32), built per step.
            r_id = lax.broadcasted_iota(jnp.int32, (w, k), 0)
            c_id = lax.broadcasted_iota(jnp.int32, (w, k), 1)
            in_seg = (r_id >= c_id * hw) & (r_id < (c_id + 1) * hw)
            seg = jnp.where(in_seg, 1.0, 0.0).astype(jnp.bfloat16)

            # Segmented sum on the MXU.  bf16 hi/lo split keeps ~f32 accuracy
            # (the 0/1 rhs is exact; accumulation is f32) without relying on
            # any matmul precision flag.
            hi = xp.astype(jnp.bfloat16)
            lo = (xp - hi.astype(jnp.float32)).astype(jnp.bfloat16)
            sums = (jnp.dot(hi, seg, preferred_element_type=jnp.float32)
                    + jnp.dot(lo, seg, preferred_element_type=jnp.float32))
            mean = sums * jnp.float32(1.0 / hw)                  # (tr, k)
            y = jnp.exp(jnp.log(mean) * inv_p)                   # mean ** (1/p)
            o_ref[...] = y.reshape(o_ref.shape).astype(o_ref.dtype)

    return kernel


def gem(x, p):
    """x: (N, C, H, W); p: (1,) float32 parameter. Returns (N, C, 1, 1)."""
    N, C, H, W = x.shape
    nc, hw = N * C, H * W

    k = _choose_pack(nc, hw)
    rows, w = nc // k, k * hw
    x2 = x.reshape(rows, w)                    # free view of contiguous NCHW

    itemsize = x2.dtype.itemsize
    sub = max(8, 32 // itemsize)               # sublane packing: 8 f32 / 16 bf16 / 32 i8

    try:
        phys_vmem = int(pltpu.get_tpu_info().vmem_capacity_bytes)
    except Exception:
        phys_vmem = 64 * 1024 * 1024           # conservative (v7x per-core VMEM)
    vmem_limit = min(64 * 1024 * 1024, (phys_vmem * 3) // 4)

    tr = _choose_row_tile(rows, w, sub, vmem_limit)
    num_tiles = _cdiv(rows, tr)

    # Best-effort headroom for very wide rows (see TODO at top of file).
    min_block = 2 * sub * _round_up(w, 128) * itemsize + (2 << 20)
    vmem_limit = max(vmem_limit, min(min_block, (phys_vmem * 7) // 8))

    kernel = _make_gem_kernel(k, hw)
    if k == 1:
        out_shape = jax.ShapeDtypeStruct((num_tiles, 1, tr), x.dtype)
        out_spec = pl.BlockSpec((1, 1, tr), lambda i: (i, 0, 0))   # lane-dense
    else:
        out_shape = jax.ShapeDtypeStruct((num_tiles, tr, k), x.dtype)
        out_spec = pl.BlockSpec((1, tr, k), lambda i: (i, 0, 0))   # tiny vs input

    out = pl.pallas_call(
        kernel,
        out_shape=out_shape,
        grid=(num_tiles,),                      # ragged last tile; no host padding
        in_specs=[
            pl.BlockSpec(memory_space=pltpu.MemorySpace.SMEM),     # p scalar
            pl.BlockSpec((tr, w), lambda i: (i, 0)),               # packed row tile
        ],
        out_specs=out_spec,
        compiler_params=pltpu.CompilerParams(
            dimension_semantics=("parallel",),  # shard row tiles across TCs (v7x)
            vmem_limit_bytes=int(vmem_limit),
        ),
    )(p, x2)

    # Row-major flatten restores the original (N*C) order for every k; garbage
    # from the ragged last tile lies beyond index nc and is sliced away.
    return out.reshape(-1)[:nc].reshape(N, C, 1, 1)


def _reference(x, p):
    pv = p[0]
    return jnp.mean(jnp.maximum(x, EPS) ** pv, axis=(2, 3), keepdims=True) ** (1.0 / pv)


if __name__ == "__main__":
    key = jax.random.PRNGKey(0)
    p = jnp.ones((1,), dtype=jnp.float32) * 3.0   # nn.Parameter(torch.ones(1) * 3)

    # 1) Packed path, lane width a multiple of 128 (hw=256, k=8).
    x = jax.random.normal(key, (2, 4, 16, 16), dtype=jnp.float32)
    out = gem(x, p)
    jax.block_until_ready(out)
    assert out.shape == (2, 4, 1, 1)
    assert jnp.allclose(out, _reference(x, p), rtol=2e-4, atol=1e-5)

    # 2) Packed path, non-128-multiple lane width + ragged row tile (hw=49).
    x2 = jax.random.normal(jax.random.PRNGKey(0), (3, 5, 7, 7), dtype=jnp.float32)
    out2 = gem(x2, p)
    jax.block_until_ready(out2)
    assert out2.shape == (3, 5, 1, 1)
    assert jnp.allclose(out2, _reference(x2, p), rtol=2e-4, atol=1e-5)

    # 3) Plain path (hw=512 already lane-dense -> k == 1).
    x3 = jax.random.normal(jax.random.PRNGKey(0), (2, 4, 16, 32), dtype=jnp.float32)
    out3 = gem(x3, p)
    jax.block_until_ready(out3)
    assert out3.shape == (2, 4, 1, 1)
    assert jnp.allclose(out3, _reference(x3, p), rtol=2e-4, atol=1e-5)

    # 4) Multi-tile grid with a ragged last tile (nc=111, k=3, 5 tiles).
    x4 = jax.random.normal(jax.random.PRNGKey(0), (3, 37, 7, 7), dtype=jnp.float32)
    out4 = gem(x4, p)
    jax.block_until_ready(out4)
    assert out4.shape == (3, 37, 1, 1)
    assert jnp.allclose(out4, _reference(x4, p), rtol=2e-4, atol=1e-5)

    print("KERNEL_OK")
</pallas_src>

<mosaic_0001>
module attributes {stable_mosaic.version = 11 : i64} {
  func.func @kernel(%arg0: i32, %arg1: memref<1xf32, #tpu.memory_space<smem>>, %arg2: memref<8x2048xf32, #tpu.memory_space<vmem>>, %arg3: memref<1x8x8xf32, #tpu.memory_space<vmem>>) attributes {dimension_semantics = [#tpu.dimension_semantics<parallel>], iteration_bounds = array<i64: 1>, scalar_prefetch = 0 : i64, scratch_operands = 0 : i64, tpu.core_type = #tpu.core_type<tc>, window_params = [{transform_indices = @transform_0, window_bounds = array<i64: 1>}, {transform_indices = @transform_1, window_bounds = array<i64: 8, 2048>}, {transform_indices = @transform_2, window_bounds = array<i64: 1, 8, 8>}]} {
    %c0 = arith.constant 0 : index
    %0 = memref.load %arg1[%c0] : memref<1xf32, #tpu.memory_space<smem>>
    %cst = arith.constant 1.000000e+00 : f32
    %1 = arith.divf %cst, %0 : f32
    %c0_0 = arith.constant 0 : index
    %c0_1 = arith.constant 0 : index
    %2 = vector.load %arg2[%c0_0, %c0_1] : memref<8x2048xf32, #tpu.memory_space<vmem>>, vector<8x2048xf32>
    %cst_2 = arith.constant 9.99999997E-7 : f32
    %3 = vector.broadcast %cst_2 : f32 to vector<8x2048xf32>
    %4 = arith.maximumf %2, %3 : vector<8x2048xf32>
    %5 = math.log %4 : vector<8x2048xf32>
    %6 = vector.broadcast %0 : f32 to vector<8x2048xf32>
    %7 = arith.mulf %6, %5 : vector<8x2048xf32>
    %8 = math.exp %7 : vector<8x2048xf32>
    %cst_3 = arith.constant 3.000000e+38 : f32
    %9 = vector.broadcast %cst_3 : f32 to vector<8x2048xf32>
    %10 = arith.cmpf olt, %8, %9 : vector<8x2048xf32>
    %cst_4 = arith.constant 0.000000e+00 : f32
    %11 = vector.broadcast %cst_4 : f32 to vector<8x2048xf32>
    %12 = arith.select %10, %8, %11 : vector<8x2048xi1>, vector<8x2048xf32>
    %13 = tpu.iota {dimensions = array<i32: 0>} : vector<2048x8xi32>
    %14 = tpu.iota {dimensions = array<i32: 1>} : vector<2048x8xi32>
    %c256_i32 = arith.constant 256 : i32
    %15 = vector.broadcast %c256_i32 : i32 to vector<2048x8xi32>
    %16 = arith.muli %14, %15 : vector<2048x8xi32>
    %17 = arith.cmpi sge, %13, %16 : vector<2048x8xi32>
    %c1_i32 = arith.constant 1 : i32
    %18 = vector.broadcast %c1_i32 : i32 to vector<2048x8xi32>
    %19 = arith.addi %14, %18 : vector<2048x8xi32>
    %c256_i32_5 = arith.constant 256 : i32
    %20 = vector.broadcast %c256_i32_5 : i32 to vector<2048x8xi32>
    %21 = arith.muli %19, %20 : vector<2048x8xi32>
    %22 = arith.cmpi slt, %13, %21 : vector<2048x8xi32>
    %23 = arith.andi %17, %22 : vector<2048x8xi1>
    %cst_6 = arith.constant 1.000000e+00 : f32
    %cst_7 = arith.constant 0.000000e+00 : f32
    %24 = vector.broadcast %cst_6 : f32 to vector<2048x8xf32>
    %25 = vector.broadcast %cst_7 : f32 to vector<2048x8xf32>
    %26 = arith.select %23, %24, %25 : vector<2048x8xi1>, vector<2048x8xf32>
    %27 = arith.truncf %26 : vector<2048x8xf32> to vector<2048x8xbf16>
    %28 = arith.truncf %12 : vector<8x2048xf32> to vector<8x2048xbf16>
    %29 = arith.extf %28 : vector<8x2048xbf16> to vector<8x2048xf32>
    %30 = arith.subf %12, %29 : vector<8x2048xf32>
    %31 = arith.truncf %30 : vector<8x2048xf32> to vector<8x2048xbf16>
    %cst_8 = arith.constant dense<0.000000e+00> : vector<8x8xf32>
    %32 = tpu.matmul %28, %27, %cst_8 {dimension_numbers = #tpu.dot_dimension_numbers<[1], [0], [0], [1], [0, 0, 1, 1], [], []>} : vector<8x2048xbf16>, vector<2048x8xbf16>, vector<8x8xf32> -> vector<8x8xf32>
    %cst_9 = arith.constant dense<0.000000e+00> : vector<8x8xf32>
    %33 = tpu.matmul %31, %27, %cst_9 {dimension_numbers = #tpu.dot_dimension_numbers<[1], [0], [0], [1], [0, 0, 1, 1], [], []>} : vector<8x2048xbf16>, vector<2048x8xbf16>, vector<8x8xf32> -> vector<8x8xf32>
    %34 = arith.addf %32, %33 : vector<8x8xf32>
    %cst_10 = arith.constant 3.906250e-03 : f32
    %35 = vector.broadcast %cst_10 : f32 to vector<8x8xf32>
    %36 = arith.mulf %34, %35 : vector<8x8xf32>
    %37 = math.log %36 : vector<8x8xf32>
    %38 = vector.broadcast %1 : f32 to vector<8x8xf32>
    %39 = arith.mulf %37, %38 : vector<8x8xf32>
    %40 = math.exp %39 : vector<8x8xf32>
    %41 = vector.shape_cast %40 : vector<8x8xf32> to vector<1x8x8xf32>
    %c0_11 = arith.constant 0 : index
    %c0_12 = arith.constant 0 : index
    %c0_13 = arith.constant 0 : index
    %42 = vector.load %arg3[%c0_11, %c0_12, %c0_13] : memref<1x8x8xf32, #tpu.memory_space<vmem>>, vector<1x8x8xf32>
    tpu.vector_store %arg3[%c0_11, %c0_12, %c0_13], %41 {strides = array<i32>} : memref<1x8x8xf32, #tpu.memory_space<vmem>>, vector<1x8x8xf32>,
    return
  }
  func.func @transform_0(%arg0: i32) -> i32 {
    %c0_i32 = arith.constant 0 : i32
    %c0_i32_0 = arith.constant 0 : i32
    return %c0_i32 : i32
  }
  func.func @transform_1(%arg0: i32) -> (i32, i32) {
    %c0_i32 = arith.constant 0 : i32
    %c0_i32_0 = arith.constant 0 : i32
    return %arg0, %c0_i32 : i32, i32
  }
  func.func @transform_2(%arg0: i32) -> (i32, i32, i32) {
    %c0_i32 = arith.constant 0 : i32
    %c0_i32_0 = arith.constant 0 : i32
    %c0_i32_1 = arith.constant 0 : i32
    return %arg0, %c0_i32, %c0_i32_0 : i32, i32, i32
  }
}

</mosaic_0001>

<llo_original>
// kernel: tpu_custom_call.1
$region0: #{tpu_custom_call.1}
  #allocation0 [shape = 'u32[]', space=smem, size = 0x4, offset = 0x4, fixed_abs, tag = 'smem constant byte address 0x4 - core index']
  #allocation1 [shape = 'u32[144,128]{1,0:T(1,128)}', space=vmem, size = 0x12000, scoped, tag = 'internal scratch']
  #allocation2 [shape = 'f32[1]{0:T(128)S(6)}', space=smem, size = 0x200, scoped, tag = 'scoped memory for tpu_custom_call.1']
  %s0 = inlined_call_operand.<no memory space> [shape: f32[1], index: 0, kind: input, shape index: {}]
  %s1 = inlined_call_operand.hbm [shape: f32[1,2048], index: 1, kind: input, shape index: {}]
  %s2 = inlined_call_operand.hbm [shape: f32[1,8,8], index: 2, kind: output, shape index: {}]
  %s3 = sld [smem:[#allocation0]]
  $region22: #{tpu_custom_call.1} parent=0
    _
  %s5 = ssub.s32 1, %s3
  %s6 = scalar_select 0, %s5, %s3
  %7 = sst [smem:[#allocation2]] %s0
  $region1: #{tpu_custom_call.1} parent=0
    #allocation3 [shape = 'u8[65536]{0}', space=vmem, size = 0x10000, scoped, tag = 'input window, operand 1, single buffered']
    #allocation4 [shape = 's32[1]{0}', space=sflag, size = 0x4, scoped, tag = 'scoped memory for tpu_custom_call.1']
    #allocation5 [shape = 's32[1]{0}', space=sflag, size = 0x4, scoped, tag = 'scoped memory for tpu_custom_call.1']
    #allocation6 [shape = 'u8[4096]{0}', space=vmem, size = 0x1000, scoped, tag = 'output window, operand 0, single buffered']
    %8 = vsyncpa [#allocation4], 0
    %9 = vsyncpa [#allocation5], 0
    // Predicated region
    $region2: #{tpu_custom_call.1} parent=1 // pred_check
      _
    $region3: #{tpu_custom_call.1} parent=1 // pred_check_branch
      %11 = sbr.rel (0) target = $region5
    $region4: #{tpu_custom_call.1} parent=1 // pred_region
      _
    $region5: #{tpu_custom_call.1} parent=1 // pred_fallthru
      _
    // Predicated region
    $region6: #{tpu_custom_call.1} parent=1 // pred_check
      _
    $region7: #{tpu_custom_call.1} parent=1 // pred_check_branch
      %13 = sbr.rel (0) target = $region9
    $region8: #{tpu_custom_call.1} parent=1 // pred_region
      %s15 = ssub.s32 2048, 256
      %16 = vsyncadd [#allocation4], %s15
      %s17 = sshll.u32 [#allocation3], 4
      %s18 = int_to_ptr.vmem [resolvable:$true] %s17
      %23 = dma.hbm_to_vmem [thread:$0]  %s1, 256, %s18, [#allocation4], 256, 256, 16
    $region9: #{tpu_custom_call.1} parent=1 // pred_fallthru
      _
    // Predicated region
    $region10: #{tpu_custom_call.1} parent=1 // pred_check
      _
    $region11: #{tpu_custom_call.1} parent=1 // pred_check_branch
      %25 = sbr.rel (0) target = $region13
    $region12: #{tpu_custom_call.1} parent=1 // pred_region
      %26 = dma.done [#allocation4], 2048
    $region13: #{tpu_custom_call.1} parent=1 // pred_fallthru
      _
    %s28 = sld [smem:[#allocation2]]
    %v29 = vstv %s28
    %v30 = vrcp.pop %v29
    %s31 = vtos %v30
    %v32 = vld [vmem:[#allocation3] sm:$0xff]
    %v33 = vld [vmem:[#allocation3 + $0x8] sm:$0xff]
    %v34 = vld [vmem:[#allocation3 + $0x10] sm:$0xff]
    %v35 = vld [vmem:[#allocation3 + $0x18] sm:$0xff]
    %v36 = vld [vmem:[#allocation3 + $0x20] sm:$0xff]
    %v37 = vld [vmem:[#allocation3 + $0x28] sm:$0xff]
    %v38 = vld [vmem:[#allocation3 + $0x30] sm:$0xff]
    %v39 = vld [vmem:[#allocation3 + $0x38] sm:$0xff]
    %v40 = vld [vmem:[#allocation3 + $0x40] sm:$0xff]
    %v41 = vld [vmem:[#allocation3 + $0x48] sm:$0xff]
    %v42 = vld [vmem:[#allocation3 + $0x50] sm:$0xff]
    %v43 = vld [vmem:[#allocation3 + $0x58] sm:$0xff]
    %v44 = vld [vmem:[#allocation3 + $0x60] sm:$0xff]
    %v45 = vld [vmem:[#allocation3 + $0x68] sm:$0xff]
    %v46 = vld [vmem:[#allocation3 + $0x70] sm:$0xff]
    %v47 = vld [vmem:[#allocation3 + $0x78] sm:$0xff]
    %v48 = vmax.f32 %v32, 1e-06
    %v49 = vmax.f32 %v33, 1e-06
    %v50 = vmax.f32 %v34, 1e-06
    %v51 = vmax.f32 %v35, 1e-06
    %v52 = vmax.f32 %v36, 1e-06
    %v53 = vmax.f32 %v37, 1e-06
    %v54 = vmax.f32 %v38, 1e-06
    %v55 = vmax.f32 %v39, 1e-06
    %v56 = vmax.f32 %v40, 1e-06
    %v57 = vmax.f32 %v41, 1e-06
    %v58 = vmax.f32 %v42, 1e-06
    %v59 = vmax.f32 %v43, 1e-06
    %v60 = vmax.f32 %v44, 1e-06
    %v61 = vmax.f32 %v45, 1e-06
    %v62 = vmax.f32 %v46, 1e-06
    %v63 = vmax.f32 %v47, 1e-06
    %v64 = vlog2.pop %v48
    %v65 = vmul.f32 %v64, 0.6931472
    %v66 = vlog2.pop %v49
    %v67 = vmul.f32 %v66, 0.6931472
    %v68 = vlog2.pop %v50
    %v69 = vmul.f32 %v68, 0.6931472
    %v70 = vlog2.pop %v51
    %v71 = vmul.f32 %v70, 0.6931472
    %v72 = vlog2.pop %v52
    %v73 = vmul.f32 %v72, 0.6931472
    %v74 = vlog2.pop %v53
    %v75 = vmul.f32 %v74, 0.6931472
    %v76 = vlog2.pop %v54
    %v77 = vmul.f32 %v76, 0.6931472
    %v78 = vlog2.pop %v55
    %v79 = vmul.f32 %v78, 0.6931472
    %v80 = vlog2.pop %v56
    %v81 = vmul.f32 %v80, 0.6931472
    %v82 = vlog2.pop %v57
    %v83 = vmul.f32 %v82, 0.6931472
    %v84 = vlog2.pop %v58
    %v85 = vmul.f32 %v84, 0.6931472
    %v86 = vlog2.pop %v59
    %v87 = vmul.f32 %v86, 0.6931472
    %v88 = vlog2.pop %v60
    %v89 = vmul.f32 %v88, 0.6931472
    %v90 = vlog2.pop %v61
    %v91 = vmul.f32 %v90, 0.6931472
    %v92 = vlog2.pop %v62
    %v93 = vmul.f32 %v92, 0.6931472
    %v94 = vlog2.pop %v63
    %v95 = vmul.f32 %v94, 0.6931472
    %v96 = vstv %s28
    %v97 = vmul.f32 %v96, %v65
    %v98 = vmul.f32 %v96, %v67
    %v99 = vmul.f32 %v96, %v69
    %v100 = vmul.f32 %v96, %v71
    %v101 = vmul.f32 %v96, %v73
    %v102 = vmul.f32 %v96, %v75
    %v103 = vmul.f32 %v96, %v77
    %v104 = vmul.f32 %v96, %v79
    %v105 = vmul.f32 %v96, %v81
    %v106 = vmul.f32 %v96, %v83
    %v107 = vmul.f32 %v96, %v85
    %v108 = vmul.f32 %v96, %v87
    %v109 = vmul.f32 %v96, %v89
    %v110 = vmul.f32 %v96, %v91
    %v111 = vmul.f32 %v96, %v93
    %v112 = vmul.f32 %v96, %v95
    %v113 = vmul.f32 %v97, 1.442695
    %v114 = vpow.pop %v113
    %v115 = vmul.f32 %v98, 1.442695
    %v116 = vpow.pop %v115
    %v117 = vmul.f32 %v99, 1.442695
    %v118 = vpow.pop %v117
    %v119 = vmul.f32 %v100, 1.442695
    %v120 = vpow.pop %v119
    %v121 = vmul.f32 %v101, 1.442695
    %v122 = vpow.pop %v121
    %v123 = vmul.f32 %v102, 1.442695
    %v124 = vpow.pop %v123
    %v125 = vmul.f32 %v103, 1.442695
    %v126 = vpow.pop %v125
    %v127 = vmul.f32 %v104, 1.442695
    %v128 = vpow.pop %v127
    %v129 = vmul.f32 %v105, 1.442695
    %v130 = vpow.pop %v129
    %v131 = vmul.f32 %v106, 1.442695
    %v132 = vpow.pop %v131
    %v133 = vmul.f32 %v107, 1.442695
    %v134 = vpow.pop %v133
    %v135 = vmul.f32 %v108, 1.442695
    %v136 = vpow.pop %v135
    %v137 = vmul.f32 %v109, 1.442695
    %v138 = vpow.pop %v137
    %v139 = vmul.f32 %v110, 1.442695
    %v140 = vpow.pop %v139
    %v141 = vmul.f32 %v111, 1.442695
    %v142 = vpow.pop %v141
    %v143 = vmul.f32 %v112, 1.442695
    %v144 = vpow.pop %v143
    %vm145 = vcmp.lt.f32.partialorder %v114, 3e+38
    %vm146 = vcmp.lt.f32.partialorder %v116, 3e+38
    %vm147 = vcmp.lt.f32.partialorder %v118, 3e+38
    %vm148 = vcmp.lt.f32.partialorder %v120, 3e+38
    %vm149 = vcmp.lt.f32.partialorder %v122, 3e+38
    %vm150 = vcmp.lt.f32.partialorder %v124, 3e+38
    %vm151 = vcmp.lt.f32.partialorder %v126, 3e+38
    %vm152 = vcmp.lt.f32.partialorder %v128, 3e+38
    %vm153 = vcmp.lt.f32.partialorder %v130, 3e+38
    %vm154 = vcmp.lt.f32.partialorder %v132, 3e+38
    %vm155 = vcmp.lt.f32.partialorder %v134, 3e+38
    %vm156 = vcmp.lt.f32.partialorder %v136, 3e+38
    %vm157 = vcmp.lt.f32.partialorder %v138, 3e+38
    %vm158 = vcmp.lt.f32.partialorder %v140, 3e+38
    %vm159 = vcmp.lt.f32.partialorder %v142, 3e+38
    %vm160 = vcmp.lt.f32.partialorder %v144, 3e+38
    %v161 = vsel %vm145, %v114, 0.0
    %v162 = vsel %vm146, %v116, 0.0
    %v163 = vsel %vm147, %v118, 0.0
    %v164 = vsel %vm148, %v120, 0.0
    %v165 = vsel %vm149, %v122, 0.0
    %v166 = vsel %vm150, %v124, 0.0
    %v167 = vsel %vm151, %v126, 0.0
    %v168 = vsel %vm152, %v128, 0.0
    %v169 = vsel %vm153, %v130, 0.0
    %v170 = vsel %vm154, %v132, 0.0
    %v171 = vsel %vm155, %v134, 0.0
    %v172 = vsel %vm156, %v136, 0.0
    %v173 = vsel %vm157, %v138, 0.0
    %v174 = vsel %vm158, %v140, 0.0
    %v175 = vsel %vm159, %v142, 0.0
    %v176 = vsel %vm160, %v144, 0.0
    %v177 = vlaneseq
    %v178 = vshrl.u32 %v177, 7
    %v179 = vadd.s32 %v178, 8
    %v180 = vadd.s32 %v178, 16
    %v181 = vadd.s32 %v178, 24
    %v182 = vadd.s32 %v178, 32
    %v183 = vadd.s32 %v178, 40
    %v184 = vadd.s32 %v178, 48
    %v185 = vadd.s32 %v178, 56
    %v186 = vadd.s32 %v178, 64
    %v187 = vadd.s32 %v178, 72
    %v188 = vadd.s32 %v178, 80
    %v189 = vadd.s32 %v178, 88
    %v190 = vadd.s32 %v178, 96
    %v191 = vadd.s32 %v178, 104
    %v192 = vadd.s32 %v178, 112
    %v193 = vadd.s32 %v178, 120
    %v194 = vadd.s32 %v178, 128
    %v195 = vadd.s32 %v178, 136
    %v196 = vadd.s32 %v178, 144
    %v197 = vadd.s32 %v178, 152
    %v198 = vadd.s32 %v178, 160
    %v199 = vadd.s32 %v178, 168
    %v200 = vadd.s32 %v178, 176
    %v201 = vadd.s32 %v178, 184
    %v202 = vadd.s32 %v178, 192
    %v203 = vadd.s32 %v178, 200
    %v204 = vadd.s32 %v178, 208
    %v205 = vadd.s32 %v178, 216
    %v206 = vadd.s32 %v178, 224
    %v207 = vadd.s32 %v178, 232
    %v208 = vadd.s32 %v178, 240
    %v209 = vadd.s32 %v178, 248
    %v210 = vadd.s32 %v178, 256
    %v211 = vadd.s32 %v178, 264
    %v212 = vadd.s32 %v178, 272
    %v213 = vadd.s32 %v178, 280
    %v214 = vadd.s32 %v178, 288
    %v215 = vadd.s32 %v178, 296
    %v216 = vadd.s32 %v178, 304
    %v217 = vadd.s32 %v178, 312
    %v218 = vadd.s32 %v178, 320
    %v219 = vadd.s32 %v178, 328
    %v220 = vadd.s32 %v178, 336
    %v221 = vadd.s32 %v178, 344
    %v222 = vadd.s32 %v178, 352
    %v223 = vadd.s32 %v178, 360
    %v224 = vadd.s32 %v178, 368
    %v225 = vadd.s32 %v178, 376
    %v226 = vadd.s32 %v178, 384
    %v227 = vadd.s32 %v178, 392
    %v228 = vadd.s32 %v178, 400
    %v229 = vadd.s32 %v178, 408
    %v230 = vadd.s32 %v178, 416
    %v231 = vadd.s32 %v178, 424
    %v232 = vadd.s32 %v178, 432
    %v233 = vadd.s32 %v178, 440
    %v234 = vadd.s32 %v178, 448
    %v235 = vadd.s32 %v178, 456
    %v236 = vadd.s32 %v178, 464
    %v237 = vadd.s32 %v178, 472
    %v238 = vadd.s32 %v178, 480
    %v239 = vadd.s32 %v178, 488
    %v240 = vadd.s32 %v178, 496
    %v241 = vadd.s32 %v178, 504
    %v242 = vadd.s32 %v178, 512
    %v243 = vadd.s32 %v178, 520
    %v244 = vadd.s32 %v178, 528
    %v245 = vadd.s32 %v178, 536
    %v246 = vadd.s32 %v178, 544
    %v247 = vadd.s32 %v178, 552
    %v248 = vadd.s32 %v178, 560
    %v249 = vadd.s32 %v178, 568
    %v250 = vadd.s32 %v178, 576
    %v251 = vadd.s32 %v178, 584
    %v252 = vadd.s32 %v178, 592
    %v253 = vadd.s32 %v178, 600
    %v254 = vadd.s32 %v178, 608
    %v255 = vadd.s32 %v178, 616
    %v256 = vadd.s32 %v178, 624
    %v257 = vadd.s32 %v178, 632
    %v258 = vadd.s32 %v178, 640
    %v259 = vadd.s32 %v178, 648
    %v260 = vadd.s32 %v178, 656
    %v261 = vadd.s32 %v178, 664
    %v262 = vadd.s32 %v178, 672
    %v263 = vadd.s32 %v178, 680
    %v264 = vadd.s32 %v178, 688
    %v265 = vadd.s32 %v178, 696
    %v266 = vadd.s32 %v178, 704
    %v267 = vadd.s32 %v178, 712
    %v268 = vadd.s32 %v178, 720
    %v269 = vadd.s32 %v178, 728
    %v270 = vadd.s32 %v178, 736
    %v271 = vadd.s32 %v178, 744
    %v272 = vadd.s32 %v178, 752
    %v273 = vadd.s32 %v178, 760
    %v274 = vadd.s32 %v178, 768
    %v275 = vadd.s32 %v178, 776
    %v276 = vadd.s32 %v178, 784
    %v277 = vadd.s32 %v178, 792
    %v278 = vadd.s32 %v178, 800
    %v279 = vadd.s32 %v178, 808
    %v280 = vadd.s32 %v178, 816
    %v281 = vadd.s32 %v178, 824
    %v282 = vadd.s32 %v178, 832
    %v283 = vadd.s32 %v178, 840
    %v284 = vadd.s32 %v178, 848
    %v285 = vadd.s32 %v178, 856
    %v286 = vadd.s32 %v178, 864
    %v287 = vadd.s32 %v178, 872
    %v288 = vadd.s32 %v178, 880
    %v289 = vadd.s32 %v178, 888
    %v290 = vadd.s32 %v178, 896
    %v291 = vadd.s32 %v178, 904
    %v292 = vadd.s32 %v178, 912
    %v293 = vadd.s32 %v178, 920
    %v294 = vadd.s32 %v178, 928
    %v295 = vadd.s32 %v178, 936
    %v296 = vadd.s32 %v178, 944
    %v297 = vadd.s32 %v178, 952
    %v298 = vadd.s32 %v178, 960
    %v299 = vadd.s32 %v178, 968
    %v300 = vadd.s32 %v178, 976
    %v301 = vadd.s32 %v178, 984
    %v302 = vadd.s32 %v178, 992
    %v303 = vadd.s32 %v178, 1000
    %v304 = vadd.s32 %v178, 1008
    %v305 = vadd.s32 %v178, 1016
    %v306 = vadd.s32 %v178, 1024
    %v307 = vadd.s32 %v178, 1032
    %v308 = vadd.s32 %v178, 1040
    %v309 = vadd.s32 %v178, 1048
    %v310 = vadd.s32 %v178, 1056
    %v311 = vadd.s32 %v178, 1064
    %v312 = vadd.s32 %v178, 1072
    %v313 = vadd.s32 %v178, 1080
    %v314 = vadd.s32 %v178, 1088
    %v315 = vadd.s32 %v178, 1096
    %v316 = vadd.s32 %v178, 1104
    %v317 = vadd.s32 %v178, 1112
    %v318 = vadd.s32 %v178, 1120
    %v319 = vadd.s32 %v178, 1128
    %v320 = vadd.s32 %v178, 1136
    %v321 = vadd.s32 %v178, 1144
    %v322 = vadd.s32 %v178, 1152
    %v323 = vadd.s32 %v178, 1160
    %v324 = vadd.s32 %v178, 1168
    %v325 = vadd.s32 %v178, 1176
    %v326 = vadd.s32 %v178, 1184
    %v327 = vadd.s32 %v178, 1192
    %v328 = vadd.s32 %v178, 1200
    %v329 = vadd.s32 %v178, 1208
    %v330 = vadd.s32 %v178, 1216
    %v331 = vadd.s32 %v178, 1224
    %v332 = vadd.s32 %v178, 1232
    %v333 = vadd.s32 %v178, 1240
    %v334 = vadd.s32 %v178, 1248
    %v335 = vadd.s32 %v178, 1256
    %v336 = vadd.s32 %v178, 1264
    %v337 = vadd.s32 %v178, 1272
    %v338 = vadd.s32 %v178, 1280
    %v339 = vadd.s32 %v178, 1288
    %v340 = vadd.s32 %v178, 1296
    %v341 = vadd.s32 %v178, 1304
    %v342 = vadd.s32 %v178, 1312
    %v343 = vadd.s32 %v178, 1320
    %v344 = vadd.s32 %v178, 1328
    %v345 = vadd.s32 %v178, 1336
    %v346 = vadd.s32 %v178, 1344
    %v347 = vadd.s32 %v178, 1352
    %v348 = vadd.s32 %v178, 1360
    %v349 = vadd.s32 %v178, 1368
    %v350 = vadd.s32 %v178, 1376
    %v351 = vadd.s32 %v178, 1384
    %v352 = vadd.s32 %v178, 1392
    %v353 = vadd.s32 %v178, 1400
    %v354 = vadd.s32 %v178, 1408
    %v355 = vadd.s32 %v178, 1416
    %v356 = vadd.s32 %v178, 1424
    %v357 = vadd.s32 %v178, 1432
    %v358 = vadd.s32 %v178, 1440
    %v359 = vadd.s32 %v178, 1448
    %v360 = vadd.s32 %v178, 1456
    %v361 = vadd.s32 %v178, 1464
    %v362 = vadd.s32 %v178, 1472
    %v363 = vadd.s32 %v178, 1480
    %v364 = vadd.s32 %v178, 1488
    %v365 = vadd.s32 %v178, 1496
    %v366 = vadd.s32 %v178, 1504
    %v367 = vadd.s32 %v178, 1512
    %v368 = vadd.s32 %v178, 1520
    %v369 = vadd.s32 %v178, 1528
    %v370 = vadd.s32 %v178, 1536
    %v371 = vadd.s32 %v178, 1544
    %v372 = vadd.s32 %v178, 1552
    %v373 = vadd.s32 %v178, 1560
    %v374 = vadd.s32 %v178, 1568
    %v375 = vadd.s32 %v178, 1576
    %v376 = vadd.s32 %v178, 1584
    %v377 = vadd.s32 %v178, 1592
    %v378 = vadd.s32 %v178, 1600
    %v379 = vadd.s32 %v178, 1608
    %v380 = vadd.s32 %v178, 1616
    %v381 = vadd.s32 %v178, 1624
    %v382 = vadd.s32 %v178, 1632
    %v383 = vadd.s32 %v178, 1640
    %v384 = vadd.s32 %v178, 1648
    %v385 = vadd.s32 %v178, 1656
    %v386 = vadd.s32 %v178, 1664
    %v387 = vadd.s32 %v178, 1672
    %v388 = vadd.s32 %v178, 1680
    %v389 = vadd.s32 %v178, 1688
    %v390 = vadd.s32 %v178, 1696
    %v391 = vadd.s32 %v178, 1704
    %v392 = vadd.s32 %v178, 1712
    %v393 = vadd.s32 %v178, 1720
    %v394 = vadd.s32 %v178, 1728
    %v395 = vadd.s32 %v178, 1736
    %v396 = vadd.s32 %v178, 1744
    %v397 = vadd.s32 %v178, 1752
    %v398 = vadd.s32 %v178, 1760
    %v399 = vadd.s32 %v178, 1768
    %v400 = vadd.s32 %v178, 1776
    %v401 = vadd.s32 %v178, 1784
    %v402 = vadd.s32 %v178, 1792
    %v403 = vadd.s32 %v178, 1800
    %v404 = vadd.s32 %v178, 1808
    %v405 = vadd.s32 %v178, 1816
    %v406 = vadd.s32 %v178, 1824
    %v407 = vadd.s32 %v178, 1832
    %v408 = vadd.s32 %v178, 1840
    %v409 = vadd.s32 %v178, 1848
    %v410 = vadd.s32 %v178, 1856
    %v411 = vadd.s32 %v178, 1864
    %v412 = vadd.s32 %v178, 1872
    %v413 = vadd.s32 %v178, 1880
    %v414 = vadd.s32 %v178, 1888
    %v415 = vadd.s32 %v178, 1896
    %v416 = vadd.s32 %v178, 1904
    %v417 = vadd.s32 %v178, 1912
    %v418 = vadd.s32 %v178, 1920
    %v419 = vadd.s32 %v178, 1928
    %v420 = vadd.s32 %v178, 1936
    %v421 = vadd.s32 %v178, 1944
    %v422 = vadd.s32 %v178, 1952
    %v423 = vadd.s32 %v178, 1960
    %v424 = vadd.s32 %v178, 1968
    %v425 = vadd.s32 %v178, 1976
    %v426 = vadd.s32 %v178, 1984
    %v427 = vadd.s32 %v178, 1992
    %v428 = vadd.s32 %v178, 2000
    %v429 = vadd.s32 %v178, 2008
    %v430 = vadd.s32 %v178, 2016
    %v431 = vadd.s32 %v178, 2024
    %v432 = vadd.s32 %v178, 2032
    %v433 = vadd.s32 %v178, 2040
    %v434 = vlaneseq
    %v435 = vand.u32 %v434, 127
    %v436 = vmul.u32 %v435, 256
    %vm437 = vcmp.ge.s32.totalorder %v178, %v436
    %vm438 = vcmp.ge.s32.totalorder %v179, %v436
    %vm439 = vcmp.ge.s32.totalorder %v180, %v436
    %vm440 = vcmp.ge.s32.totalorder %v181, %v436
    %vm441 = vcmp.ge.s32.totalorder %v182, %v436
    %vm442 = vcmp.ge.s32.totalorder %v183, %v436
    %vm443 = vcmp.ge.s32.totalorder %v184, %v436
    %vm444 = vcmp.ge.s32.totalorder %v185, %v436
    %vm445 = vcmp.ge.s32.totalorder %v186, %v436
    %vm446 = vcmp.ge.s32.totalorder %v187, %v436
    %vm447 = vcmp.ge.s32.totalorder %v188, %v436
    %vm448 = vcmp.ge.s32.totalorder %v189, %v436
    %vm449 = vcmp.ge.s32.totalorder %v190, %v436
    %vm450 = vcmp.ge.s32.totalorder %v191, %v436
    %vm451 = vcmp.ge.s32.totalorder %v192, %v436
    %vm452 = vcmp.ge.s32.totalorder %v193, %v436
    %vm453 = vcmp.ge.s32.totalorder %v194, %v436
    %vm454 = vcmp.ge.s32.totalorder %v195, %v436
    %vm455 = vcmp.ge.s32.totalorder %v196, %v436
    %vm456 = vcmp.ge.s32.totalorder %v197, %v436
    %vm457 = vcmp.ge.s32.totalorder %v198, %v436
    %vm458 = vcmp.ge.s32.totalorder %v199, %v436
    %vm459 = vcmp.ge.s32.totalorder %v200, %v436
    %vm460 = vcmp.ge.s32.totalorder %v201, %v436
    %vm461 = vcmp.ge.s32.totalorder %v202, %v436
    %vm462 = vcmp.ge.s32.totalorder %v203, %v436
    %vm463 = vcmp.ge.s32.totalorder %v204, %v436
    %vm464 = vcmp.ge.s32.totalorder %v205, %v436
    %vm465 = vcmp.ge.s32.totalorder %v206, %v436
    %vm466 = vcmp.ge.s32.totalorder %v207, %v436
    %vm467 = vcmp.ge.s32.totalorder %v208, %v436
    %vm468 = vcmp.ge.s32.totalorder %v209, %v436
    %vm469 = vcmp.ge.s32.totalorder %v210, %v436
    %vm470 = vcmp.ge.s32.totalorder %v211, %v436
    %vm471 = vcmp.ge.s32.totalorder %v212, %v436
    %vm472 = vcmp.ge.s32.totalorder %v213, %v436
    %vm473 = vcmp.ge.s32.totalorder %v214, %v436
    %vm474 = vcmp.ge.s32.totalorder %v215, %v436
    %vm475 = vcmp.ge.s32.totalorder %v216, %v436
    %vm476 = vcmp.ge.s32.totalorder %v217, %v436
    %vm477 = vcmp.ge.s32.totalorder %v218, %v436
    %vm478 = vcmp.ge.s32.totalorder %v219, %v436
    %vm479 = vcmp.ge.s32.totalorder %v220, %v436
    %vm480 = vcmp.ge.s32.totalorder %v221, %v436
    %vm481 = vcmp.ge.s32.totalorder %v222, %v436
    %vm482 = vcmp.ge.s32.totalorder %v223, %v436
    %vm483 = vcmp.ge.s32.totalorder %v224, %v436
    %vm484 = vcmp.ge.s32.totalorder %v225, %v436
    %vm485 = vcmp.ge.s32.totalorder %v226, %v436
    %vm486 = vcmp.ge.s32.totalorder %v227, %v436
    %vm487 = vcmp.ge.s32.totalorder %v228, %v436
    %vm488 = vcmp.ge.s32.totalorder %v229, %v436
    %vm489 = vcmp.ge.s32.totalorder %v230, %v436
    %vm490 = vcmp.ge.s32.totalorder %v231, %v436
    %vm491 = vcmp.ge.s32.totalorder %v232, %v436
    %vm492 = vcmp.ge.s32.totalorder %v233, %v436
    %vm493 = vcmp.ge.s32.totalorder %v234, %v436
    %vm494 = vcmp.ge.s32.totalorder %v235, %v436
    %vm495 = vcmp.ge.s32.totalorder %v236, %v436
    %vm496 = vcmp.ge.s32.totalorder %v237, %v436
    %vm497 = vcmp.ge.s32.totalorder %v238, %v436
    %vm498 = vcmp.ge.s32.totalorder %v239, %v436
    %vm499 = vcmp.ge.s32.totalorder %v240, %v436
    %vm500 = vcmp.ge.s32.totalorder %v241, %v436
    %vm501 = vcmp.ge.s32.totalorder %v242, %v436
    %vm502 = vcmp.ge.s32.totalorder %v243, %v436
    %vm503 = vcmp.ge.s32.totalorder %v244, %v436
    %vm504 = vcmp.ge.s32.totalorder %v245, %v436
    %vm505 = vcmp.ge.s32.totalorder %v246, %v436
    %vm506 = vcmp.ge.s32.totalorder %v247, %v436
    %vm507 = vcmp.ge.s32.totalorder %v248, %v436
    %vm508 = vcmp.ge.s32.totalorder %v249, %v436
    %vm509 = vcmp.ge.s32.totalorder %v250, %v436
    %vm510 = vcmp.ge.s32.totalorder %v251, %v436
    %vm511 = vcmp.ge.s32.totalorder %v252, %v436
    %vm512 = vcmp.ge.s32.totalorder %v253, %v436
    %vm513 = vcmp.ge.s32.totalorder %v254, %v436
    %vm514 = vcmp.ge.s32.totalorder %v255, %v436
    %vm515 = vcmp.ge.s32.totalorder %v256, %v436
    %vm516 = vcmp.ge.s32.totalorder %v257, %v436
    %vm517 = vcmp.ge.s32.totalorder %v258, %v436
    %vm518 = vcmp.ge.s32.totalorder %v259, %v436
    %vm519 = vcmp.ge.s32.totalorder %v260, %v436
    %vm520 = vcmp.ge.s32.totalorder %v261, %v436
    %vm521 = vcmp.ge.s32.totalorder %v262, %v436
    %vm522 = vcmp.ge.s32.totalorder %v263, %v436
    %vm523 = vcmp.ge.s32.totalorder %v264, %v436
    %vm524 = vcmp.ge.s32.totalorder %v265, %v436
    %vm525 = vcmp.ge.s32.totalorder %v266, %v436
    %vm526 = vcmp.ge.s32.totalorder %v267, %v436
    %vm527 = vcmp.ge.s32.totalorder %v268, %v436
    %vm528 = vcmp.ge.s32.totalorder %v269, %v436
    %vm529 = vcmp.ge.s32.totalorder %v270, %v436
    %vm530 = vcmp.ge.s32.totalorder %v271, %v436
    %vm531 = vcmp.ge.s32.totalorder %v272, %v436
    %vm532 = vcmp.ge.s32.totalorder %v273, %v436
    %vm533 = vcmp.ge.s32.totalorder %v274, %v436
    %vm534 = vcmp.ge.s32.totalorder %v275, %v436
    %vm535 = vcmp.ge.s32.totalorder %v276, %v436
    %vm536 = vcmp.ge.s32.totalorder %v277, %v436
    %vm537 = vcmp.ge.s32.totalorder %v278, %v436
    %vm538 = vcmp.ge.s32.totalorder %v279, %v436
    %vm539 = vcmp.ge.s32.totalorder %v280, %v436
    %vm540 = vcmp.ge.s32.totalorder %v281, %v436
    %vm541 = vcmp.ge.s32.totalorder %v282, %v436
    %vm542 = vcmp.ge.s32.totalorder %v283, %v436
    %vm543 = vcmp.ge.s32.totalorder %v284, %v436
    %vm544 = vcmp.ge.s32.totalorder %v285, %v436
    %vm545 = vcmp.ge.s32.totalorder %v286, %v436
    %vm546 = vcmp.ge.s32.totalorder %v287, %v436
    %vm547 = vcmp.ge.s32.totalorder %v288, %v436
    %vm548 = vcmp.ge.s32.totalorder %v289, %v436
    %vm549 = vcmp.ge.s32.totalorder %v290, %v436
    %vm550 = vcmp.ge.s32.totalorder %v291, %v436
    %vm551 = vcmp.ge.s32.totalorder %v292, %v436
    %vm552 = vcmp.ge.s32.totalorder %v293, %v436
    %vm553 = vcmp.ge.s32.totalorder %v294, %v436
    %vm554 = vcmp.ge.s32.totalorder %v295, %v436
    %vm555 = vcmp.ge.s32.totalorder %v296, %v436
    %vm556 = vcmp.ge.s32.totalorder %v297, %v436
    %vm557 = vcmp.ge.s32.totalorder %v298, %v436
    %vm558 = vcmp.ge.s32.totalorder %v299, %v436
    %vm559 = vcmp.ge.s32.totalorder %v300, %v436
    %vm560 = vcmp.ge.s32.totalorder %v301, %v436
    %vm561 = vcmp.ge.s32.totalorder %v302, %v436
    %vm562 = vcmp.ge.s32.totalorder %v303, %v436
    %vm563 = vcmp.ge.s32.totalorder %v304, %v436
    %vm564 = vcmp.ge.s32.totalorder %v305, %v436
    %vm565 = vcmp.ge.s32.totalorder %v306, %v436
    %vm566 = vcmp.ge.s32.totalorder %v307, %v436
    %vm567 = vcmp.ge.s32.totalorder %v308, %v436
    %vm568 = vcmp.ge.s32.totalorder %v309, %v436
    %vm569 = vcmp.ge.s32.totalorder %v310, %v436
    %vm570 = vcmp.ge.s32.totalorder %v311, %v436
    %vm571 = vcmp.ge.s32.totalorder %v312, %v436
    %vm572 = vcmp.ge.s32.totalorder %v313, %v436
    %vm573 = vcmp.ge.s32.totalorder %v314, %v436
    %vm574 = vcmp.ge.s32.totalorder %v315, %v436
    %vm575 = vcmp.ge.s32.totalorder %v316, %v436
    %vm576 = vcmp.ge.s32.totalorder %v317, %v436
    %vm577 = vcmp.ge.s32.totalorder %v318, %v436
    %vm578 = vcmp.ge.s32.totalorder %v319, %v436
    %vm579 = vcmp.ge.s32.totalorder %v320, %v436
    %vm580 = vcmp.ge.s32.totalorder %v321, %v436
    %vm581 = vcmp.ge.s32.totalorder %v322, %v436
    %vm582 = vcmp.ge.s32.totalorder %v323, %v436
    %vm583 = vcmp.ge.s32.totalorder %v324, %v436
    %vm584 = vcmp.ge.s32.totalorder %v325, %v436
    %vm585 = vcmp.ge.s32.totalorder %v326, %v436
    %vm586 = vcmp.ge.s32.totalorder %v327, %v436
    %vm587 = vcmp.ge.s32.totalorder %v328, %v436
    %vm588 = vcmp.ge.s32.totalorder %v329, %v436
    %vm589 = vcmp.ge.s32.totalorder %v330, %v436
    %vm590 = vcmp.ge.s32.totalorder %v331, %v436
    %vm591 = vcmp.ge.s32.totalorder %v332, %v436
    %vm592 = vcmp.ge.s32.totalorder %v333, %v436
    %vm593 = vcmp.ge.s32.totalorder %v334, %v436
    %vm594 = vcmp.ge.s32.totalorder %v335, %v436
    %vm595 = vcmp.ge.s32.totalorder %v336, %v436
    %vm596 = vcmp.ge.s32.totalorder %v337, %v436
    %vm597 = vcmp.ge.s32.totalorder %v338, %v436
    %vm598 = vcmp.ge.s32.totalorder %v339, %v436
    %vm599 = vcmp.ge.s32.totalorder %v340, %v436
    %vm600 = vcmp.ge.s32.totalorder %v341, %v436
    %vm601 = vcmp.ge.s32.totalorder %v342, %v436
    %vm602 = vcmp.ge.s32.totalorder %v343, %v436
    %vm603 = vcmp.ge.s32.totalorder %v344, %v436
    %vm604 = vcmp.ge.s32.totalorder %v345, %v436
    %vm605 = vcmp.ge.s32.totalorder %v346, %v436
    %vm606 = vcmp.ge.s32.totalorder %v347, %v436
    %vm607 = vcmp.ge.s32.totalorder %v348, %v436
    %vm608 = vcmp.ge.s32.totalorder %v349, %v436
    %vm609 = vcmp.ge.s32.totalorder %v350, %v436
    %vm610 = vcmp.ge.s32.totalorder %v351, %v436
    %vm611 = vcmp.ge.s32.totalorder %v352, %v436
    %vm612 = vcmp.ge.s32.totalorder %v353, %v436
    %vm613 = vcmp.ge.s32.totalorder %v354, %v436
    %vm614 = vcmp.ge.s32.totalorder %v355, %v436
    %vm615 = vcmp.ge.s32.totalorder %v356, %v436
    %vm616 = vcmp.ge.s32.totalorder %v357, %v436
    %vm617 = vcmp.ge.s32.totalorder %v358, %v436
    %vm618 = vcmp.ge.s32.totalorder %v359, %v436
    %vm619 = vcmp.ge.s32.totalorder %v360, %v436
    %vm620 = vcmp.ge.s32.totalorder %v361, %v436
    %vm621 = vcmp.ge.s32.totalorder %v362, %v436
    %vm622 = vcmp.ge.s32.totalorder %v363, %v436
    %vm623 = vcmp.ge.s32.totalorder %v364, %v436
    %vm624 = vcmp.ge.s32.totalorder %v365, %v436
    %vm625 = vcmp.ge.s32.totalorder %v366, %v436
    %vm626 = vcmp.ge.s32.totalorder %v367, %v436
    %vm627 = vcmp.ge.s32.totalorder %v368, %v436
    %vm628 = vcmp.ge.s32.totalorder %v369, %v436
    %vm629 = vcmp.ge.s32.totalorder %v370, %v436
    %vm630 = vcmp.ge.s32.totalorder %v371, %v436
    %vm631 = vcmp.ge.s32.totalorder %v372, %v436
    %vm632 = vcmp.ge.s32.totalorder %v373, %v436
    %vm633 = vcmp.ge.s32.totalorder %v374, %v436
    %vm634 = vcmp.ge.s32.totalorder %v375, %v436
    %vm635 = vcmp.ge.s32.totalorder %v376, %v436
    %vm636 = vcmp.ge.s32.totalorder %v377, %v436
    %vm637 = vcmp.ge.s32.totalorder %v378, %v436
    %vm638 = vcmp.ge.s32.totalorder %v379, %v436
    %vm639 = vcmp.ge.s32.totalorder %v380, %v436
    %vm640 = vcmp.ge.s32.totalorder %v381, %v436
    %vm641 = vcmp.ge.s32.totalorder %v382, %v436
    %vm642 = vcmp.ge.s32.totalorder %v383, %v436
    %vm643 = vcmp.ge.s32.totalorder %v384, %v436
    %vm644 = vcmp.ge.s32.totalorder %v385, %v436
    %vm645 = vcmp.ge.s32.totalorder %v386, %v436
    %vm646 = vcmp.ge.s32.totalorder %v387, %v436
    %vm647 = vcmp.ge.s32.totalorder %v388, %v436
    %vm648 = vcmp.ge.s32.totalorder %v389, %v436
    %vm649 = vcmp.ge.s32.totalorder %v390, %v436
    %vm650 = vcmp.ge.s32.totalorder %v391, %v436
    %vm651 = vcmp.ge.s32.totalorder %v392, %v436
    %vm652 = vcmp.ge.s32.totalorder %v393, %v436
    %vm653 = vcmp.ge.s32.totalorder %v394, %v436
    %vm654 = vcmp.ge.s32.totalorder %v395, %v436
    %vm655 = vcmp.ge.s32.totalorder %v396, %v436
    %vm656 = vcmp.ge.s32.totalorder %v397, %v436
    %vm657 = vcmp.ge.s32.totalorder %v398, %v436
    %vm658 = vcmp.ge.s32.totalorder %v399, %v436
    %vm659 = vcmp.ge.s32.totalorder %v400, %v436
    %vm660 = vcmp.ge.s32.totalorder %v401, %v436
    %vm661 = vcmp.ge.s32.totalorder %v402, %v436
    %vm662 = vcmp.ge.s32.totalorder %v403, %v436
    %vm663 = vcmp.ge.s32.totalorder %v404, %v436
    %vm664 = vcmp.ge.s32.totalorder %v405, %v436
    %vm665 = vcmp.ge.s32.totalorder %v406, %v436
    %vm666 = vcmp.ge.s32.totalorder %v407, %v436
    %vm667 = vcmp.ge.s32.totalorder %v408, %v436
    %vm668 = vcmp.ge.s32.totalorder %v409, %v436
    %vm669 = vcmp.ge.s32.totalorder %v410, %v436
    %vm670 = vcmp.ge.s32.totalorder %v411, %v436
    %vm671 = vcmp.ge.s32.totalorder %v412, %v436
    %vm672 = vcmp.ge.s32.totalorder %v413, %v436
    %vm673 = vcmp.ge.s32.totalorder %v414, %v436
    %vm674 = vcmp.ge.s32.totalorder %v415, %v436
    %vm675 = vcmp.ge.s32.totalorder %v416, %v436
    %vm676 = vcmp.ge.s32.totalorder %v417, %v436
    %vm677 = vcmp.ge.s32.totalorder %v418, %v436
    %vm678 = vcmp.ge.s32.totalorder %v419, %v436
    %vm679 = vcmp.ge.s32.totalorder %v420, %v436
    %vm680 = vcmp.ge.s32.totalorder %v421, %v436
    %vm681 = vcmp.ge.s32.totalorder %v422, %v436
    %vm682 = vcmp.ge.s32.totalorder %v423, %v436
    %vm683 = vcmp.ge.s32.totalorder %v424, %v436
    %vm684 = vcmp.ge.s32.totalorder %v425, %v436
    %vm685 = vcmp.ge.s32.totalorder %v426, %v436
    %vm686 = vcmp.ge.s32.totalorder %v427, %v436
    %vm687 = vcmp.ge.s32.totalorder %v428, %v436
    %vm688 = vcmp.ge.s32.totalorder %v429, %v436
    %vm689 = vcmp.ge.s32.totalorder %v430, %v436
    %vm690 = vcmp.ge.s32.totalorder %v431, %v436
    %vm691 = vcmp.ge.s32.totalorder %v432, %v436
    %vm692 = vcmp.ge.s32.totalorder %v433, %v436
    %v693 = vadd.s32 %v435, 1
    %v694 = vmul.u32 %v693, 256
    %vm695 = vcmp.lt.s32.totalorder %v178, %v694
    %vm696 = vcmp.lt.s32.totalorder %v179, %v694
    %vm697 = vcmp.lt.s32.totalorder %v180, %v694
    %vm698 = vcmp.lt.s32.totalorder %v181, %v694
    %vm699 = vcmp.lt.s32.totalorder %v182, %v694
    %vm700 = vcmp.lt.s32.totalorder %v183, %v694
    %vm701 = vcmp.lt.s32.totalorder %v184, %v694
    %vm702 = vcmp.lt.s32.totalorder %v185, %v694
    %vm703 = vcmp.lt.s32.totalorder %v186, %v694
    %vm704 = vcmp.lt.s32.totalorder %v187, %v694
    %vm705 = vcmp.lt.s32.totalorder %v188, %v694
    %vm706 = vcmp.lt.s32.totalorder %v189, %v694
    %vm707 = vcmp.lt.s32.totalorder %v190, %v694
    %vm708 = vcmp.lt.s32.totalorder %v191, %v694
    %vm709 = vcmp.lt.s32.totalorder %v192, %v694
    %vm710 = vcmp.lt.s32.totalorder %v193, %v694
    %vm711 = vcmp.lt.s32.totalorder %v194, %v694
    %vm712 = vcmp.lt.s32.totalorder %v195, %v694
    %vm713 = vcmp.lt.s32.totalorder %v196, %v694
    %vm714 = vcmp.lt.s32.totalorder %v197, %v694
    %vm715 = vcmp.lt.s32.totalorder %v198, %v694
    %vm716 = vcmp.lt.s32.totalorder %v199, %v694
    %vm717 = vcmp.lt.s32.totalorder %v200, %v694
    %vm718 = vcmp.lt.s32.totalorder %v201, %v694
    %vm719 = vcmp.lt.s32.totalorder %v202, %v694
    %vm720 = vcmp.lt.s32.totalorder %v203, %v694
    %vm721 = vcmp.lt.s32.totalorder %v204, %v694
    %vm722 = vcmp.lt.s32.totalorder %v205, %v694
    %vm723 = vcmp.lt.s32.totalorder %v206, %v694
    %vm724 = vcmp.lt.s32.totalorder %v207, %v694
    %vm725 = vcmp.lt.s32.totalorder %v208, %v694
    %vm726 = vcmp.lt.s32.totalorder %v209, %v694
    %vm727 = vcmp.lt.s32.totalorder %v210, %v694
    %vm728 = vcmp.lt.s32.totalorder %v211, %v694
    %vm729 = vcmp.lt.s32.totalorder %v212, %v694
    %vm730 = vcmp.lt.s32.totalorder %v213, %v694
    %vm731 = vcmp.lt.s32.totalorder %v214, %v694
    %vm732 = vcmp.lt.s32.totalorder %v215, %v694
    %vm733 = vcmp.lt.s32.totalorder %v216, %v694
    %vm734 = vcmp.lt.s32.totalorder %v217, %v694
    %vm735 = vcmp.lt.s32.totalorder %v218, %v694
    %vm736 = vcmp.lt.s32.totalorder %v219, %v694
    %vm737 = vcmp.lt.s32.totalorder %v220, %v694
    %vm738 = vcmp.lt.s32.totalorder %v221, %v694
    %vm739 = vcmp.lt.s32.totalorder %v222, %v694
    %vm740 = vcmp.lt.s32.totalorder %v223, %v694
    %vm741 = vcmp.lt.s32.totalorder %v224, %v694
    %vm742 = vcmp.lt.s32.totalorder %v225, %v694
    %vm743 = vcmp.lt.s32.totalorder %v226, %v694
    %vm744 = vcmp.lt.s32.totalorder %v227, %v694
    %vm745 = vcmp.lt.s32.totalorder %v228, %v694
    %vm746 = vcmp.lt.s32.totalorder %v229, %v694
    %vm747 = vcmp.lt.s32.totalorder %v230, %v694
    %vm748 = vcmp.lt.s32.totalorder %v231, %v694
    %vm749 = vcmp.lt.s32.totalorder %v232, %v694
    %vm750 = vcmp.lt.s32.totalorder %v233, %v694
    %vm751 = vcmp.lt.s32.totalorder %v234, %v694
    %vm752 = vcmp.lt.s32.totalorder %v235, %v694
    %vm753 = vcmp.lt.s32.totalorder %v236, %v694
    %vm754 = vcmp.lt.s32.totalorder %v237, %v694
    %vm755 = vcmp.lt.s32.totalorder %v238, %v694
    %vm756 = vcmp.lt.s32.totalorder %v239, %v694
    %vm757 = vcmp.lt.s32.totalorder %v240, %v694
    %vm758 = vcmp.lt.s32.totalorder %v241, %v694
    %vm759 = vcmp.lt.s32.totalorder %v242, %v694
    %vm760 = vcmp.lt.s32.totalorder %v243, %v694
    %vm761 = vcmp.lt.s32.totalorder %v244, %v694
    %vm762 = vcmp.lt.s32.totalorder %v245, %v694
    %vm763 = vcmp.lt.s32.totalorder %v246, %v694
    %vm764 = vcmp.lt.s32.totalorder %v247, %v694
    %vm765 = vcmp.lt.s32.totalorder %v248, %v694
    %vm766 = vcmp.lt.s32.totalorder %v249, %v694
    %vm767 = vcmp.lt.s32.totalorder %v250, %v694
    %vm768 = vcmp.lt.s32.totalorder %v251, %v694
    %vm769 = vcmp.lt.s32.totalorder %v252, %v694
    %vm770 = vcmp.lt.s32.totalorder %v253, %v694
    %vm771 = vcmp.lt.s32.totalorder %v254, %v694
    %vm772 = vcmp.lt.s32.totalorder %v255, %v694
    %vm773 = vcmp.lt.s32.totalorder %v256, %v694
    %vm774 = vcmp.lt.s32.totalorder %v257, %v694
    %vm775 = vcmp.lt.s32.totalorder %v258, %v694
    %vm776 = vcmp.lt.s32.totalorder %v259, %v694
    %vm777 = vcmp.lt.s32.totalorder %v260, %v694
    %vm778 = vcmp.lt.s32.totalorder %v261, %v694
    %vm779 = vcmp.lt.s32.totalorder %v262, %v694
    %vm780 = vcmp.lt.s32.totalorder %v263, %v694
    %vm781 = vcmp.lt.s32.totalorder %v264, %v694
    %vm782 = vcmp.lt.s32.totalorder %v265, %v694
    %vm783 = vcmp.lt.s32.totalorder %v266, %v694
    %vm784 = vcmp.lt.s32.totalorder %v267, %v694
    %vm785 = vcmp.lt.s32.totalorder %v268, %v694
    %vm786 = vcmp.lt.s32.totalorder %v269, %v694
    %vm787 = vcmp.lt.s32.totalorder %v270, %v694
    %vm788 = vcmp.lt.s32.totalorder %v271, %v694
    %vm789 = vcmp.lt.s32.totalorder %v272, %v694
    %vm790 = vcmp.lt.s32.totalorder %v273, %v694
    %vm791 = vcmp.lt.s32.totalorder %v274, %v694
    %vm792 = vcmp.lt.s32.totalorder %v275, %v694
    %vm793 = vcmp.lt.s32.totalorder %v276, %v694
    %vm794 = vcmp.lt.s32.totalorder %v277, %v694
    %vm795 = vcmp.lt.s32.totalorder %v278, %v694
    %vm796 = vcmp.lt.s32.totalorder %v279, %v694
    %vm797 = vcmp.lt.s32.totalorder %v280, %v694
    %vm798 = vcmp.lt.s32.totalorder %v281, %v694
    %vm799 = vcmp.lt.s32.totalorder %v282, %v694
    %vm800 = vcmp.lt.s32.totalorder %v283, %v694
    %vm801 = vcmp.lt.s32.totalorder %v284, %v694
    %vm802 = vcmp.lt.s32.totalorder %v285, %v694
    %vm803 = vcmp.lt.s32.totalorder %v286, %v694
    %vm804 = vcmp.lt.s32.totalorder %v287, %v694
    %vm805 = vcmp.lt.s32.totalorder %v288, %v694
    %vm806 = vcmp.lt.s32.totalorder %v289, %v694
    %vm807 = vcmp.lt.s32.totalorder %v290, %v694
    %vm808 = vcmp.lt.s32.totalorder %v291, %v694
    %vm809 = vcmp.lt.s32.totalorder %v292, %v694
    %vm810 = vcmp.lt.s32.totalorder %v293, %v694
    %vm811 = vcmp.lt.s32.totalorder %v294, %v694
    %vm812 = vcmp.lt.s32.totalorder %v295, %v694
    %vm813 = vcmp.lt.s32.totalorder %v296, %v694
    %vm814 = vcmp.lt.s32.totalorder %v297, %v694
    %vm815 = vcmp.lt.s32.totalorder %v298, %v694
    %vm816 = vcmp.lt.s32.totalorder %v299, %v694
    %vm817 = vcmp.lt.s32.totalorder %v300, %v694
    %vm818 = vcmp.lt.s32.totalorder %v301, %v694
    %vm819 = vcmp.lt.s32.totalorder %v302, %v694
    %vm820 = vcmp.lt.s32.totalorder %v303, %v694
    %vm821 = vcmp.lt.s32.totalorder %v304, %v694
    %vm822 = vcmp.lt.s32.totalorder %v305, %v694
    %vm823 = vcmp.lt.s32.totalorder %v306, %v694
    %vm824 = vcmp.lt.s32.totalorder %v307, %v694
    %vm825 = vcmp.lt.s32.totalorder %v308, %v694
    %vm826 = vcmp.lt.s32.totalorder %v309, %v694
    %vm827 = vcmp.lt.s32.totalorder %v310, %v694
    %vm828 = vcmp.lt.s32.totalorder %v311, %v694
    %vm829 = vcmp.lt.s32.totalorder %v312, %v694
    %vm830 = vcmp.lt.s32.totalorder %v313, %v694
    %vm831 = vcmp.lt.s32.totalorder %v314, %v694
    %vm832 = vcmp.lt.s32.totalorder %v315, %v694
    %vm833 = vcmp.lt.s32.totalorder %v316, %v694
    %vm834 = vcmp.lt.s32.totalorder %v317, %v694
    %vm835 = vcmp.lt.s32.totalorder %v318, %v694
    %vm836 = vcmp.lt.s32.totalorder %v319, %v694
    %vm837 = vcmp.lt.s32.totalorder %v320, %v694
    %vm838 = vcmp.lt.s32.totalorder %v321, %v694
    %vm839 = vcmp.lt.s32.totalorder %v322, %v694
    %vm840 = vcmp.lt.s32.totalorder %v323, %v694
    %vm841 = vcmp.lt.s32.totalorder %v324, %v694
    %vm842 = vcmp.lt.s32.totalorder %v325, %v694
    %vm843 = vcmp.lt.s32.totalorder %v326, %v694
    %vm844 = vcmp.lt.s32.totalorder %v327, %v694
    %vm845 = vcmp.lt.s32.totalorder %v328, %v694
    %vm846 = vcmp.lt.s32.totalorder %v329, %v694
    %vm847 = vcmp.lt.s32.totalorder %v330, %v694
    %vm848 = vcmp.lt.s32.totalorder %v331, %v694
    %vm849 = vcmp.lt.s32.totalorder %v332, %v694
    %vm850 = vcmp.lt.s32.totalorder %v333, %v694
    %vm851 = vcmp.lt.s32.totalorder %v334, %v694
    %vm852 = vcmp.lt.s32.totalorder %v335, %v694
    %vm853 = vcmp.lt.s32.totalorder %v336, %v694
    %vm854 = vcmp.lt.s32.totalorder %v337, %v694
    %vm855 = vcmp.lt.s32.totalorder %v338, %v694
    %vm856 = vcmp.lt.s32.totalorder %v339, %v694
    %vm857 = vcmp.lt.s32.totalorder %v340, %v694
    %vm858 = vcmp.lt.s32.totalorder %v341, %v694
    %vm859 = vcmp.lt.s32.totalorder %v342, %v694
    %vm860 = vcmp.lt.s32.totalorder %v343, %v694
    %vm861 = vcmp.lt.s32.totalorder %v344, %v694
    %vm862 = vcmp.lt.s32.totalorder %v345, %v694
    %vm863 = vcmp.lt.s32.totalorder %v346, %v694
    %vm864 = vcmp.lt.s32.totalorder %v347, %v694
    %vm865 = vcmp.lt.s32.totalorder %v348, %v694
    %vm866 = vcmp.lt.s32.totalorder %v349, %v694
    %vm867 = vcmp.lt.s32.totalorder %v350, %v694
    %vm868 = vcmp.lt.s32.totalorder %v351, %v694
    %vm869 = vcmp.lt.s32.totalorder %v352, %v694
    %vm870 = vcmp.lt.s32.totalorder %v353, %v694
    %vm871 = vcmp.lt.s32.totalorder %v354, %v694
    %vm872 = vcmp.lt.s32.totalorder %v355, %v694
    %vm873 = vcmp.lt.s32.totalorder %v356, %v694
    %vm874 = vcmp.lt.s32.totalorder %v357, %v694
    %vm875 = vcmp.lt.s32.totalorder %v358, %v694
    %vm876 = vcmp.lt.s32.totalorder %v359, %v694
    %vm877 = vcmp.lt.s32.totalorder %v360, %v694
    %vm878 = vcmp.lt.s32.totalorder %v361, %v694
    %vm879 = vcmp.lt.s32.totalorder %v362, %v694
    %vm880 = vcmp.lt.s32.totalorder %v363, %v694
    %vm881 = vcmp.lt.s32.totalorder %v364, %v694
    %vm882 = vcmp.lt.s32.totalorder %v365, %v694
    %vm883 = vcmp.lt.s32.totalorder %v366, %v694
    %vm884 = vcmp.lt.s32.totalorder %v367, %v694
    %vm885 = vcmp.lt.s32.totalorder %v368, %v694
    %vm886 = vcmp.lt.s32.totalorder %v369, %v694
    %vm887 = vcmp.lt.s32.totalorder %v370, %v694
    %vm888 = vcmp.lt.s32.totalorder %v371, %v694
    %vm889 = vcmp.lt.s32.totalorder %v372, %v694
    %vm890 = vcmp.lt.s32.totalorder %v373, %v694
    %vm891 = vcmp.lt.s32.totalorder %v374, %v694
    %vm892 = vcmp.lt.s32.totalorder %v375, %v694
    %vm893 = vcmp.lt.s32.totalorder %v376, %v694
    %vm894 = vcmp.lt.s32.totalorder %v377, %v694
    %vm895 = vcmp.lt.s32.totalorder %v378, %v694
    %vm896 = vcmp.lt.s32.totalorder %v379, %v694
    %vm897 = vcmp.lt.s32.totalorder %v380, %v694
    %vm898 = vcmp.lt.s32.totalorder %v381, %v694
    %vm899 = vcmp.lt.s32.totalorder %v382, %v694
    %vm900 = vcmp.lt.s32.totalorder %v383, %v694
    %vm901 = vcmp.lt.s32.totalorder %v384, %v694
    %vm902 = vcmp.lt.s32.totalorder %v385, %v694
    %vm903 = vcmp.lt.s32.totalorder %v386, %v694
    %vm904 = vcmp.lt.s32.totalorder %v387, %v694
    %vm905 = vcmp.lt.s32.totalorder %v388, %v694
    %vm906 = vcmp.lt.s32.totalorder %v389, %v694
    %vm907 = vcmp.lt.s32.totalorder %v390, %v694
    %vm908 = vcmp.lt.s32.totalorder %v391, %v694
    %vm909 = vcmp.lt.s32.totalorder %v392, %v694
    %vm910 = vcmp.lt.s32.totalorder %v393, %v694
    %vm911 = vcmp.lt.s32.totalorder %v394, %v694
    %vm912 = vcmp.lt.s32.totalorder %v395, %v694
    %vm913 = vcmp.lt.s32.totalorder %v396, %v694
    %vm914 = vcmp.lt.s32.totalorder %v397, %v694
    %vm915 = vcmp.lt.s32.totalorder %v398, %v694
    %vm916 = vcmp.lt.s32.totalorder %v399, %v694
    %vm917 = vcmp.lt.s32.totalorder %v400, %v694
    %vm918 = vcmp.lt.s32.totalorder %v401, %v694
    %vm919 = vcmp.lt.s32.totalorder %v402, %v694
    %vm920 = vcmp.lt.s32.totalorder %v403, %v694
    %vm921 = vcmp.lt.s32.totalorder %v404, %v694
    %vm922 = vcmp.lt.s32.totalorder %v405, %v694
    %vm923 = vcmp.lt.s32.totalorder %v406, %v694
    %vm924 = vcmp.lt.s32.totalorder %v407, %v694
    %vm925 = vcmp.lt.s32.totalorder %v408, %v694
    %vm926 = vcmp.lt.s32.totalorder %v409, %v694
    %vm927 = vcmp.lt.s32.totalorder %v410, %v694
    %vm928 = vcmp.lt.s32.totalorder %v411, %v694
    %vm929 = vcmp.lt.s32.totalorder %v412, %v694
    %vm930 = vcmp.lt.s32.totalorder %v413, %v694
    %vm931 = vcmp.lt.s32.totalorder %v414, %v694
    %vm932 = vcmp.lt.s32.totalorder %v415, %v694
    %vm933 = vcmp.lt.s32.totalorder %v416, %v694
    %vm934 = vcmp.lt.s32.totalorder %v417, %v694
    %vm935 = vcmp.lt.s32.totalorder %v418, %v694
    %vm936 = vcmp.lt.s32.totalorder %v419, %v694
    %vm937 = vcmp.lt.s32.totalorder %v420, %v694
    %vm938 = vcmp.lt.s32.totalorder %v421, %v694
    %vm939 = vcmp.lt.s32.totalorder %v422, %v694
    %vm940 = vcmp.lt.s32.totalorder %v423, %v694
    %vm941 = vcmp.lt.s32.totalorder %v424, %v694
    %vm942 = vcmp.lt.s32.totalorder %v425, %v694
    %vm943 = vcmp.lt.s32.totalorder %v426, %v694
    %vm944 = vcmp.lt.s32.totalorder %v427, %v694
    %vm945 = vcmp.lt.s32.totalorder %v428, %v694
    %vm946 = vcmp.lt.s32.totalorder %v429, %v694
    %vm947 = vcmp.lt.s32.totalorder %v430, %v694
    %vm948 = vcmp.lt.s32.totalorder %v431, %v694
    %vm949 = vcmp.lt.s32.totalorder %v432, %v694
    %vm950 = vcmp.lt.s32.totalorder %v433, %v694
    %vm951 = vmand %vm437, %vm695
    %vm952 = vmand %vm438, %vm696
    %vm953 = vmand %vm439, %vm697
    %vm954 = vmand %vm440, %vm698
    %vm955 = vmand %vm441, %vm699
    %vm956 = vmand %vm442, %vm700
    %vm957 = vmand %vm443, %vm701
    %vm958 = vmand %vm444, %vm702
    %vm959 = vmand %vm445, %vm703
    %vm960 = vmand %vm446, %vm704
    %vm961 = vmand %vm447, %vm705
    %vm962 = vmand %vm448, %vm706
    %vm963 = vmand %vm449, %vm707
    %vm964 = vmand %vm450, %vm708
    %vm965 = vmand %vm451, %vm709
    %vm966 = vmand %vm452, %vm710
    %vm967 = vmand %vm453, %vm711
    %vm968 = vmand %vm454, %vm712
    %vm969 = vmand %vm455, %vm713
    %vm970 = vmand %vm456, %vm714
    %vm971 = vmand %vm457, %vm715
    %vm972 = vmand %vm458, %vm716
    %vm973 = vmand %vm459, %vm717
    %vm974 = vmand %vm460, %vm718
    %vm975 = vmand %vm461, %vm719
    %vm976 = vmand %vm462, %vm720
    %vm977 = vmand %vm463, %vm721
    %vm978 = vmand %vm464, %vm722
    %vm979 = vmand %vm465, %vm723
    %vm980 = vmand %vm466, %vm724
    %vm981 = vmand %vm467, %vm725
    %vm982 = vmand %vm468, %vm726
    %vm983 = vmand %vm469, %vm727
    %vm984 = vmand %vm470, %vm728
    %vm985 = vmand %vm471, %vm729
    %vm986 = vmand %vm472, %vm730
    %vm987 = vmand %vm473, %vm731
    %vm988 = vmand %vm474, %vm732
    %vm989 = vmand %vm475, %vm733
    %vm990 = vmand %vm476, %vm734
    %vm991 = vmand %vm477, %vm735
    %vm992 = vmand %vm478, %vm736
    %vm993 = vmand %vm479, %vm737
    %vm994 = vmand %vm480, %vm738
    %vm995 = vmand %vm481, %vm739
    %vm996 = vmand %vm482, %vm740
    %vm997 = vmand %vm483, %vm741
    %vm998 = vmand %vm484, %vm742
    %vm999 = vmand %vm485, %vm743
    %vm1000 = vmand %vm486, %vm744
    %vm1001 = vmand %vm487, %vm745
    %vm1002 = vmand %vm488, %vm746
    %vm1003 = vmand %vm489, %vm747
    %vm1004 = vmand %vm490, %vm748
    %vm1005 = vmand %vm491, %vm749
    %vm1006 = vmand %vm492, %vm750
    %vm1007 = vmand %vm493, %vm751
    %vm1008 = vmand %vm494, %vm752
    %vm1009 = vmand %vm495, %vm753
    %vm1010 = vmand %vm496, %vm754
    %vm1011 = vmand %vm497, %vm755
    %vm1012 = vmand %vm498, %vm756
    %vm1013 = vmand %vm499, %vm757
    %vm1014 = vmand %vm500, %vm758
    %vm1015 = vmand %vm501, %vm759
    %vm1016 = vmand %vm502, %vm760
    %vm1017 = vmand %vm503, %vm761
    %vm1018 = vmand %vm504, %vm762
    %vm1019 = vmand %vm505, %vm763
    %vm1020 = vmand %vm506, %vm764
    %vm1021 = vmand %vm507, %vm765
    %vm1022 = vmand %vm508, %vm766
    %vm1023 = vmand %vm509, %vm767
    %vm1024 = vmand %vm510, %vm768
    %vm1025 = vmand %vm511, %vm769
    %vm1026 = vmand %vm512, %vm770
    %vm1027 = vmand %vm513, %vm771
    %vm1028 = vmand %vm514, %vm772
    %vm1029 = vmand %vm515, %vm773
    %vm1030 = vmand %vm516, %vm774
    %vm1031 = vmand %vm517, %vm775
    %vm1032 = vmand %vm518, %vm776
    %vm1033 = vmand %vm519, %vm777
    %vm1034 = vmand %vm520, %vm778
    %vm1035 = vmand %vm521, %vm779
    %vm1036 = vmand %vm522, %vm780
    %vm1037 = vmand %vm523, %vm781
    %vm1038 = vmand %vm524, %vm782
    %vm1039 = vmand %vm525, %vm783
    %vm1040 = vmand %vm526, %vm784
    %vm1041 = vmand %vm527, %vm785
    %vm1042 = vmand %vm528, %vm786
    %vm1043 = vmand %vm529, %vm787
    %vm1044 = vmand %vm530, %vm788
    %vm1045 = vmand %vm531, %vm789
    %vm1046 = vmand %vm532, %vm790
    %vm1047 = vmand %vm533, %vm791
    %vm1048 = vmand %vm534, %vm792
    %vm1049 = vmand %vm535, %vm793
    %vm1050 = vmand %vm536, %vm794
    %vm1051 = vmand %vm537, %vm795
    %vm1052 = vmand %vm538, %vm796
    %vm1053 = vmand %vm539, %vm797
    %vm1054 = vmand %vm540, %vm798
    %vm1055 = vmand %vm541, %vm799
    %vm1056 = vmand %vm542, %vm800
    %vm1057 = vmand %vm543, %vm801
    %vm1058 = vmand %vm544, %vm802
    %vm1059 = vmand %vm545, %vm803
    %vm1060 = vmand %vm546, %vm804
    %vm1061 = vmand %vm547, %vm805
    %vm1062 = vmand %vm548, %vm806
    %vm1063 = vmand %vm549, %vm807
    %vm1064 = vmand %vm550, %vm808
    %vm1065 = vmand %vm551, %vm809
    %vm1066 = vmand %vm552, %vm810
    %vm1067 = vmand %vm553, %vm811
    %vm1068 = vmand %vm554, %vm812
    %vm1069 = vmand %vm555, %vm813
    %vm1070 = vmand %vm556, %vm814
    %vm1071 = vmand %vm557, %vm815
    %vm1072 = vmand %vm558, %vm816
    %vm1073 = vmand %vm559, %vm817
    %vm1074 = vmand %vm560, %vm818
    %vm1075 = vmand %vm561, %vm819
    %vm1076 = vmand %vm562, %vm820
    %vm1077 = vmand %vm563, %vm821
    %vm1078 = vmand %vm564, %vm822
    %vm1079 = vmand %vm565, %vm823
    %vm1080 = vmand %vm566, %vm824
    %vm1081 = vmand %vm567, %vm825
    %vm1082 = vmand %vm568, %vm826
    %vm1083 = vmand %vm569, %vm827
    %vm1084 = vmand %vm570, %vm828
    %vm1085 = vmand %vm571, %vm829
    %vm1086 = vmand %vm572, %vm830
    %vm1087 = vmand %vm573, %vm831
    %vm1088 = vmand %vm574, %vm832
    %vm1089 = vmand %vm575, %vm833
    %vm1090 = vmand %vm576, %vm834
    %vm1091 = vmand %vm577, %vm835
    %vm1092 = vmand %vm578, %vm836
    %vm1093 = vmand %vm579, %vm837
    %vm1094 = vmand %vm580, %vm838
    %vm1095 = vmand %vm581, %vm839
    %vm1096 = vmand %vm582, %vm840
    %vm1097 = vmand %vm583, %vm841
    %vm1098 = vmand %vm584, %vm842
    %vm1099 = vmand %vm585, %vm843
    %vm1100 = vmand %vm586, %vm844
    %vm1101 = vmand %vm587, %vm845
    %vm1102 = vmand %vm588, %vm846
    %vm1103 = vmand %vm589, %vm847
    %vm1104 = vmand %vm590, %vm848
    %vm1105 = vmand %vm591, %vm849
    %vm1106 = vmand %vm592, %vm850
    %vm1107 = vmand %vm593, %vm851
    %vm1108 = vmand %vm594, %vm852
    %vm1109 = vmand %vm595, %vm853
    %vm1110 = vmand %vm596, %vm854
    %vm1111 = vmand %vm597, %vm855
    %vm1112 = vmand %vm598, %vm856
    %vm1113 = vmand %vm599, %vm857
    %vm1114 = vmand %vm600, %vm858
    %vm1115 = vmand %vm601, %vm859
    %vm1116 = vmand %vm602, %vm860
    %vm1117 = vmand %vm603, %vm861
    %vm1118 = vmand %vm604, %vm862
    %vm1119 = vmand %vm605, %vm863
    %vm1120 = vmand %vm606, %vm864
    %vm1121 = vmand %vm607, %vm865
    %vm1122 = vmand %vm608, %vm866
    %vm1123 = vmand %vm609, %vm867
    %vm1124 = vmand %vm610, %vm868
    %vm1125 = vmand %vm611, %vm869
    %vm1126 = vmand %vm612, %vm870
    %vm1127 = vmand %vm613, %vm871
    %vm1128 = vmand %vm614, %vm872
    %vm1129 = vmand %vm615, %vm873
    %vm1130 = vmand %vm616, %vm874
    %vm1131 = vmand %vm617, %vm875
    %vm1132 = vmand %vm618, %vm876
    %vm1133 = vmand %vm619, %vm877
    %vm1134 = vmand %vm620, %vm878
    %vm1135 = vmand %vm621, %vm879
    %vm1136 = vmand %vm622, %vm880
    %vm1137 = vmand %vm623, %vm881
    %vm1138 = vmand %vm624, %vm882
    %vm1139 = vmand %vm625, %vm883
    %vm1140 = vmand %vm626, %vm884
    %vm1141 = vmand %vm627, %vm885
    %vm1142 = vmand %vm628, %vm886
    %vm1143 = vmand %vm629, %vm887
    %vm1144 = vmand %vm630, %vm888
    %vm1145 = vmand %vm631, %vm889
    %vm1146 = vmand %vm632, %vm890
    %vm1147 = vmand %vm633, %vm891
    %vm1148 = vmand %vm634, %vm892
    %vm1149 = vmand %vm635, %vm893
    %vm1150 = vmand %vm636, %vm894
    %vm1151 = vmand %vm637, %vm895
    %vm1152 = vmand %vm638, %vm896
    %vm1153 = vmand %vm639, %vm897
    %vm1154 = vmand %vm640, %vm898
    %vm1155 = vmand %vm641, %vm899
    %vm1156 = vmand %vm642, %vm900
    %vm1157 = vmand %vm643, %vm901
    %vm1158 = vmand %vm644, %vm902
    %vm1159 = vmand %vm645, %vm903
    %vm1160 = vmand %vm646, %vm904
    %vm1161 = vmand %vm647, %vm905
    %vm1162 = vmand %vm648, %vm906
    %vm1163 = vmand %vm649, %vm907
    %vm1164 = vmand %vm650, %vm908
    %vm1165 = vmand %vm651, %vm909
    %vm1166 = vmand %vm652, %vm910
    %vm1167 = vmand %vm653, %vm911
    %vm1168 = vmand %vm654, %vm912
    %vm1169 = vmand %vm655, %vm913
    %vm1170 = vmand %vm656, %vm914
    %vm1171 = vmand %vm657, %vm915
    %vm1172 = vmand %vm658, %vm916
    %vm1173 = vmand %vm659, %vm917
    %vm1174 = vmand %vm660, %vm918
    %vm1175 = vmand %vm661, %vm919
    %vm1176 = vmand %vm662, %vm920
    %vm1177 = vmand %vm663, %vm921
    %vm1178 = vmand %vm664, %vm922
    %vm1179 = vmand %vm665, %vm923
    %vm1180 = vmand %vm666, %vm924
    %vm1181 = vmand %vm667, %vm925
    %vm1182 = vmand %vm668, %vm926
    %vm1183 = vmand %vm669, %vm927
    %vm1184 = vmand %vm670, %vm928
    %vm1185 = vmand %vm671, %vm929
    %vm1186 = vmand %vm672, %vm930
    %vm1187 = vmand %vm673, %vm931
    %vm1188 = vmand %vm674, %vm932
    %vm1189 = vmand %vm675, %vm933
    %vm1190 = vmand %vm676, %vm934
    %vm1191 = vmand %vm677, %vm935
    %vm1192 = vmand %vm678, %vm936
    %vm1193 = vmand %vm679, %vm937
    %vm1194 = vmand %vm680, %vm938
    %vm1195 = vmand %vm681, %vm939
    %vm1196 = vmand %vm682, %vm940
    %vm1197 = vmand %vm683, %vm941
    %vm1198 = vmand %vm684, %vm942
    %vm1199 = vmand %vm685, %vm943
    %vm1200 = vmand %vm686, %vm944
    %vm1201 = vmand %vm687, %vm945
    %vm1202 = vmand %vm688, %vm946
    %vm1203 = vmand %vm689, %vm947
    %vm1204 = vmand %vm690, %vm948
    %vm1205 = vmand %vm691, %vm949
    %vm1206 = vmand %vm692, %vm950
    %v1207 = vsel %vm951, 1.0, 0.0
    %v1208 = vsel %vm952, 1.0, 0.0
    %v1209 = vsel %vm953, 1.0, 0.0
    %v1210 = vsel %vm954, 1.0, 0.0
    %v1211 = vsel %vm955, 1.0, 0.0
    %v1212 = vsel %vm956, 1.0, 0.0
    %v1213 = vsel %vm957, 1.0, 0.0
    %v1214 = vsel %vm958, 1.0, 0.0
    %v1215 = vsel %vm959, 1.0, 0.0
    %v1216 = vsel %vm960, 1.0, 0.0
    %v1217 = vsel %vm961, 1.0, 0.0
    %v1218 = vsel %vm962, 1.0, 0.0
    %v1219 = vsel %vm963, 1.0, 0.0
    %v1220 = vsel %vm964, 1.0, 0.0
    %v1221 = vsel %vm965, 1.0, 0.0
    %v1222 = vsel %vm966, 1.0, 0.0
    %v1223 = vsel %vm967, 1.0, 0.0
    %v1224 = vsel %vm968, 1.0, 0.0
    %v1225 = vsel %vm969, 1.0, 0.0
    %v1226 = vsel %vm970, 1.0, 0.0
    %v1227 = vsel %vm971, 1.0, 0.0
    %v1228 = vsel %vm972, 1.0, 0.0
    %v1229 = vsel %vm973, 1.0, 0.0
    %v1230 = vsel %vm974, 1.0, 0.0
    %v1231 = vsel %vm975, 1.0, 0.0
    %v1232 = vsel %vm976, 1.0, 0.0
    %v1233 = vsel %vm977, 1.0, 0.0
    %v1234 = vsel %vm978, 1.0, 0.0
    %v1235 = vsel %vm979, 1.0, 0.0
    %v1236 = vsel %vm980, 1.0, 0.0
    %v1237 = vsel %vm981, 1.0, 0.0
    %v1238 = vsel %vm982, 1.0, 0.0
    %v1239 = vsel %vm983, 1.0, 0.0
    %v1240 = vsel %vm984, 1.0, 0.0
    %v1241 = vsel %vm985, 1.0, 0.0
    %v1242 = vsel %vm986, 1.0, 0.0
    %v1243 = vsel %vm987, 1.0, 0.0
    %v1244 = vsel %vm988, 1.0, 0.0
    %v1245 = vsel %vm989, 1.0, 0.0
    %v1246 = vsel %vm990, 1.0, 0.0
    %v1247 = vsel %vm991, 1.0, 0.0
    %v1248 = vsel %vm992, 1.0, 0.0
    %v1249 = vsel %vm993, 1.0, 0.0
    %v1250 = vsel %vm994, 1.0, 0.0
    %v1251 = vsel %vm995, 1.0, 0.0
    %v1252 = vsel %vm996, 1.0, 0.0
    %v1253 = vsel %vm997, 1.0, 0.0
    %v1254 = vsel %vm998, 1.0, 0.0
    %v1255 = vsel %vm999, 1.0, 0.0
    %v1256 = vsel %vm1000, 1.0, 0.0
    %v1257 = vsel %vm1001, 1.0, 0.0
    %v1258 = vsel %vm1002, 1.0, 0.0
    %v1259 = vsel %vm1003, 1.0, 0.0
    %v1260 = vsel %vm1004, 1.0, 0.0
    %v1261 = vsel %vm1005, 1.0, 0.0
    %v1262 = vsel %vm1006, 1.0, 0.0
    %v1263 = vsel %vm1007, 1.0, 0.0
    %v1264 = vsel %vm1008, 1.0, 0.0
    %v1265 = vsel %vm1009, 1.0, 0.0
    %v1266 = vsel %vm1010, 1.0, 0.0
    %v1267 = vsel %vm1011, 1.0, 0.0
    %v1268 = vsel %vm1012, 1.0, 0.0
    %v1269 = vsel %vm1013, 1.0, 0.0
    %v1270 = vsel %vm1014, 1.0, 0.0
    %v1271 = vsel %vm1015, 1.0, 0.0
    %v1272 = vsel %vm1016, 1.0, 0.0
    %v1273 = vsel %vm1017, 1.0, 0.0
    %v1274 = vsel %vm1018, 1.0, 0.0
    %v1275 = vsel %vm1019, 1.0, 0.0
    %v1276 = vsel %vm1020, 1.0, 0.0
    %v1277 = vsel %vm1021, 1.0, 0.0
    %v1278 = vsel %vm1022, 1.0, 0.0
    %v1279 = vsel %vm1023, 1.0, 0.0
    %v1280 = vsel %vm1024, 1.0, 0.0
    %v1281 = vsel %vm1025, 1.0, 0.0
    %v1282 = vsel %vm1026, 1.0, 0.0
    %v1283 = vsel %vm1027, 1.0, 0.0
    %v1284 = vsel %vm1028, 1.0, 0.0
    %v1285 = vsel %vm1029, 1.0, 0.0
    %v1286 = vsel %vm1030, 1.0, 0.0
    %v1287 = vsel %vm1031, 1.0, 0.0
    %v1288 = vsel %vm1032, 1.0, 0.0
    %v1289 = vsel %vm1033, 1.0, 0.0
    %v1290 = vsel %vm1034, 1.0, 0.0
    %v1291 = vsel %vm1035, 1.0, 0.0
    %v1292 = vsel %vm1036, 1.0, 0.0
    %v1293 = vsel %vm1037, 1.0, 0.0
    %v1294 = vsel %vm1038, 1.0, 0.0
    %v1295 = vsel %vm1039, 1.0, 0.0
    %v1296 = vsel %vm1040, 1.0, 0.0
    %v1297 = vsel %vm1041, 1.0, 0.0
    %v1298 = vsel %vm1042, 1.0, 0.0
    %v1299 = vsel %vm1043, 1.0, 0.0
    %v1300 = vsel %vm1044, 1.0, 0.0
    %v1301 = vsel %vm1045, 1.0, 0.0
    %v1302 = vsel %vm1046, 1.0, 0.0
    %v1303 = vsel %vm1047, 1.0, 0.0
    %v1304 = vsel %vm1048, 1.0, 0.0
    %v1305 = vsel %vm1049, 1.0, 0.0
    %v1306 = vsel %vm1050, 1.0, 0.0
    %v1307 = vsel %vm1051, 1.0, 0.0
    %v1308 = vsel %vm1052, 1.0, 0.0
    %v1309 = vsel %vm1053, 1.0, 0.0
    %v1310 = vsel %vm1054, 1.0, 0.0
    %v1311 = vsel %vm1055, 1.0, 0.0
    %v1312 = vsel %vm1056, 1.0, 0.0
    %v1313 = vsel %vm1057, 1.0, 0.0
    %v1314 = vsel %vm1058, 1.0, 0.0
    %v1315 = vsel %vm1059, 1.0, 0.0
    %v1316 = vsel %vm1060, 1.0, 0.0
    %v1317 = vsel %vm1061, 1.0, 0.0
    %v1318 = vsel %vm1062, 1.0, 0.0
    %v1319 = vsel %vm1063, 1.0, 0.0
    %v1320 = vsel %vm1064, 1.0, 0.0
    %v1321 = vsel %vm1065, 1.0, 0.0
    %v1322 = vsel %vm1066, 1.0, 0.0
    %v1323 = vsel %vm1067, 1.0, 0.0
    %v1324 = vsel %vm1068, 1.0, 0.0
    %v1325 = vsel %vm1069, 1.0, 0.0
    %v1326 = vsel %vm1070, 1.0, 0.0
    %v1327 = vsel %vm1071, 1.0, 0.0
    %v1328 = vsel %vm1072, 1.0, 0.0
    %v1329 = vsel %vm1073, 1.0, 0.0
    %v1330 = vsel %vm1074, 1.0, 0.0
    %v1331 = vsel %vm1075, 1.0, 0.0
    %v1332 = vsel %vm1076, 1.0, 0.0
    %v1333 = vsel %vm1077, 1.0, 0.0
    %v1334 = vsel %vm1078, 1.0, 0.0
    %v1335 = vsel %vm1079, 1.0, 0.0
    %v1336 = vsel %vm1080, 1.0, 0.0
    %v1337 = vsel %vm1081, 1.0, 0.0
    %v1338 = vsel %vm1082, 1.0, 0.0
    %v1339 = vsel %vm1083, 1.0, 0.0
    %v1340 = vsel %vm1084, 1.0, 0.0
    %v1341 = vsel %vm1085, 1.0, 0.0
    %v1342 = vsel %vm1086, 1.0, 0.0
    %v1343 = vsel %vm1087, 1.0, 0.0
    %v1344 = vsel %vm1088, 1.0, 0.0
    %v1345 = vsel %vm1089, 1.0, 0.0
    %v1346 = vsel %vm1090, 1.0, 0.0
    %v1347 = vsel %vm1091, 1.0, 0.0
    %v1348 = vsel %vm1092, 1.0, 0.0
    %v1349 = vsel %vm1093, 1.0, 0.0
    %v1350 = vsel %vm1094, 1.0, 0.0
    %v1351 = vsel %vm1095, 1.0, 0.0
    %v1352 = vsel %vm1096, 1.0, 0.0
    %v1353 = vsel %vm1097, 1.0, 0.0
    %v1354 = vsel %vm1098, 1.0, 0.0
    %v1355 = vsel %vm1099, 1.0, 0.0
    %v1356 = vsel %vm1100, 1.0, 0.0
    %v1357 = vsel %vm1101, 1.0, 0.0
    %v1358 = vsel %vm1102, 1.0, 0.0
    %v1359 = vsel %vm1103, 1.0, 0.0
    %v1360 = vsel %vm1104, 1.0, 0.0
    %v1361 = vsel %vm1105, 1.0, 0.0
    %v1362 = vsel %vm1106, 1.0, 0.0
    %v1363 = vsel %vm1107, 1.0, 0.0
    %v1364 = vsel %vm1108, 1.0, 0.0
    %v1365 = vsel %vm1109, 1.0, 0.0
    %v1366 = vsel %vm1110, 1.0, 0.0
    %v1367 = vsel %vm1111, 1.0, 0.0
    %v1368 = vsel %vm1112, 1.0, 0.0
    %v1369 = vsel %vm1113, 1.0, 0.0
    %v1370 = vsel %vm1114, 1.0, 0.0
    %v1371 = vsel %vm1115, 1.0, 0.0
    %v1372 = vsel %vm1116, 1.0, 0.0
    %v1373 = vsel %vm1117, 1.0, 0.0
    %v1374 = vsel %vm1118, 1.0, 0.0
    %v1375 = vsel %vm1119, 1.0, 0.0
    %v1376 = vsel %vm1120, 1.0, 0.0
    %v1377 = vsel %vm1121, 1.0, 0.0
    %v1378 = vsel %vm1122, 1.0, 0.0
    %v1379 = vsel %vm1123, 1.0, 0.0
    %v1380 = vsel %vm1124, 1.0, 0.0
    %v1381 = vsel %vm1125, 1.0, 0.0
    %v1382 = vsel %vm1126, 1.0, 0.0
    %v1383 = vsel %vm1127, 1.0, 0.0
    %v1384 = vsel %vm1128, 1.0, 0.0
    %v1385 = vsel %vm1129, 1.0, 0.0
    %v1386 = vsel %vm1130, 1.0, 0.0
    %v1387 = vsel %vm1131, 1.0, 0.0
    %v1388 = vsel %vm1132, 1.0, 0.0
    %v1389 = vsel %vm1133, 1.0, 0.0
    %v1390 = vsel %vm1134, 1.0, 0.0
    %v1391 = vsel %vm1135, 1.0, 0.0
    %v1392 = vsel %vm1136, 1.0, 0.0
    %v1393 = vsel %vm1137, 1.0, 0.0
    %v1394 = vsel %vm1138, 1.0, 0.0
    %v1395 = vsel %vm1139, 1.0, 0.0
    %v1396 = vsel %vm1140, 1.0, 0.0
    %v1397 = vsel %vm1141, 1.0, 0.0
    %v1398 = vsel %vm1142, 1.0, 0.0
    %v1399 = vsel %vm1143, 1.0, 0.0
    %v1400 = vsel %vm1144, 1.0, 0.0
    %v1401 = vsel %vm1145, 1.0, 0.0
    %v1402 = vsel %vm1146, 1.0, 0.0
    %v1403 = vsel %vm1147, 1.0, 0.0
    %v1404 = vsel %vm1148, 1.0, 0.0
    %v1405 = vsel %vm1149, 1.0, 0.0
    %v1406 = vsel %vm1150, 1.0, 0.0
    %v1407 = vsel %vm1151, 1.0, 0.0
    %v1408 = vsel %vm1152, 1.0, 0.0
    %v1409 = vsel %vm1153, 1.0, 0.0
    %v1410 = vsel %vm1154, 1.0, 0.0
    %v1411 = vsel %vm1155, 1.0, 0.0
    %v1412 = vsel %vm1156, 1.0, 0.0
    %v1413 = vsel %vm1157, 1.0, 0.0
    %v1414 = vsel %vm1158, 1.0, 0.0
    %v1415 = vsel %vm1159, 1.0, 0.0
    %v1416 = vsel %vm1160, 1.0, 0.0
    %v1417 = vsel %vm1161, 1.0, 0.0
    %v1418 = vsel %vm1162, 1.0, 0.0
    %v1419 = vsel %vm1163, 1.0, 0.0
    %v1420 = vsel %vm1164, 1.0, 0.0
    %v1421 = vsel %vm1165, 1.0, 0.0
    %v1422 = vsel %vm1166, 1.0, 0.0
    %v1423 = vsel %vm1167, 1.0, 0.0
    %v1424 = vsel %vm1168, 1.0, 0.0
    %v1425 = vsel %vm1169, 1.0, 0.0
    %v1426 = vsel %vm1170, 1.0, 0.0
    %v1427 = vsel %vm1171, 1.0, 0.0
    %v1428 = vsel %vm1172, 1.0, 0.0
    %v1429 = vsel %vm1173, 1.0, 0.0
    %v1430 = vsel %vm1174, 1.0, 0.0
    %v1431 = vsel %vm1175, 1.0, 0.0
    %v1432 = vsel %vm1176, 1.0, 0.0
    %v1433 = vsel %vm1177, 1.0, 0.0
    %v1434 = vsel %vm1178, 1.0, 0.0
    %v1435 = vsel %vm1179, 1.0, 0.0
    %v1436 = vsel %vm1180, 1.0, 0.0
    %v1437 = vsel %vm1181, 1.0, 0.0
    %v1438 = vsel %vm1182, 1.0, 0.0
    %v1439 = vsel %vm1183, 1.0, 0.0
    %v1440 = vsel %vm1184, 1.0, 0.0
    %v1441 = vsel %vm1185, 1.0, 0.0
    %v1442 = vsel %vm1186, 1.0, 0.0
    %v1443 = vsel %vm1187, 1.0, 0.0
    %v1444 = vsel %vm1188, 1.0, 0.0
    %v1445 = vsel %vm1189, 1.0, 0.0
    %v1446 = vsel %vm1190, 1.0, 0.0
    %v1447 = vsel %vm1191, 1.0, 0.0
    %v1448 = vsel %vm1192, 1.0, 0.0
    %v1449 = vsel %vm1193, 1.0, 0.0
    %v1450 = vsel %vm1194, 1.0, 0.0
    %v1451 = vsel %vm1195, 1.0, 0.0
    %v1452 = vsel %vm1196, 1.0, 0.0
    %v1453 = vsel %vm1197, 1.0, 0.0
    %v1454 = vsel %vm1198, 1.0, 0.0
    %v1455 = vsel %vm1199, 1.0, 0.0
    %v1456 = vsel %vm1200, 1.0, 0.0
    %v1457 = vsel %vm1201, 1.0, 0.0
    %v1458 = vsel %vm1202, 1.0, 0.0
    %v1459 = vsel %vm1203, 1.0, 0.0
    %v1460 = vsel %vm1204, 1.0, 0.0
    %v1461 = vsel %vm1205, 1.0, 0.0
    %v1462 = vsel %vm1206, 1.0, 0.0
    %v1463 = vpack.c.bf16 %v1208, %v1207
    %v1464 = vpack.c.bf16 %v1210, %v1209
    %v1465 = vpack.c.bf16 %v1212, %v1211
    %v1466 = vpack.c.bf16 %v1214, %v1213
    %v1467 = vpack.c.bf16 %v1216, %v1215
    %v1468 = vpack.c.bf16 %v1218, %v1217
    %v1469 = vpack.c.bf16 %v1220, %v1219
    %v1470 = vpack.c.bf16 %v1222, %v1221
    %v1471 = vpack.c.bf16 %v1224, %v1223
    %v1472 = vpack.c.bf16 %v1226, %v1225
    %v1473 = vpack.c.bf16 %v1228, %v1227
    %v1474 = vpack.c.bf16 %v1230, %v1229
    %v1475 = vpack.c.bf16 %v1232, %v1231
    %v1476 = vpack.c.bf16 %v1234, %v1233
    %v1477 = vpack.c.bf16 %v1236, %v1235
    %v1478 = vpack.c.bf16 %v1238, %v1237
    %v1479 = vpack.c.bf16 %v1240, %v1239
    %v1480 = vpack.c.bf16 %v1242, %v1241
    %v1481 = vpack.c.bf16 %v1244, %v1243
    %v1482 = vpack.c.bf16 %v1246, %v1245
    %v1483 = vpack.c.bf16 %v1248, %v1247
    %v1484 = vpack.c.bf16 %v1250, %v1249
    %v1485 = vpack.c.bf16 %v1252, %v1251
    %v1486 = vpack.c.bf16 %v1254, %v1253
    %v1487 = vpack.c.bf16 %v1256, %v1255
    %v1488 = vpack.c.bf16 %v1258, %v1257
    %v1489 = vpack.c.bf16 %v1260, %v1259
    %v1490 = vpack.c.bf16 %v1262, %v1261
    %v1491 = vpack.c.bf16 %v1264, %v1263
    %v1492 = vpack.c.bf16 %v1266, %v1265
    %v1493 = vpack.c.bf16 %v1268, %v1267
    %v1494 = vpack.c.bf16 %v1270, %v1269
    %v1495 = vpack.c.bf16 %v1272, %v1271
    %v1496 = vpack.c.bf16 %v1274, %v1273
    %v1497 = vpack.c.bf16 %v1276, %v1275
    %v1498 = vpack.c.bf16 %v1278, %v1277
    %v1499 = vpack.c.bf16 %v1280, %v1279
    %v1500 = vpack.c.bf16 %v1282, %v1281
    %v1501 = vpack.c.bf16 %v1284, %v1283
    %v1502 = vpack.c.bf16 %v1286, %v1285
    %v1503 = vpack.c.bf16 %v1288, %v1287
    %v1504 = vpack.c.bf16 %v1290, %v1289
    %v1505 = vpack.c.bf16 %v1292, %v1291
    %v1506 = vpack.c.bf16 %v1294, %v1293
    %v1507 = vpack.c.bf16 %v1296, %v1295
    %v1508 = vpack.c.bf16 %v1298, %v1297
    %v1509 = vpack.c.bf16 %v1300, %v1299
    %v1510 = vpack.c.bf16 %v1302, %v1301
    %v1511 = vpack.c.bf16 %v1304, %v1303
    %v1512 = vpack.c.bf16 %v1306, %v1305
    %v1513 = vpack.c.bf16 %v1308, %v1307
    %v1514 = vpack.c.bf16 %v1310, %v1309
    %v1515 = vpack.c.bf16 %v1312, %v1311
    %v1516 = vpack.c.bf16 %v1314, %v1313
    %v1517 = vpack.c.bf16 %v1316, %v1315
    %v1518 = vpack.c.bf16 %v1318, %v1317
    %v1519 = vpack.c.bf16 %v1320, %v1319
    %v1520 = vpack.c.bf16 %v1322, %v1321
    %v1521 = vpack.c.bf16 %v1324, %v1323
    %v1522 = vpack.c.bf16 %v1326, %v1325
    %v1523 = vpack.c.bf16 %v1328, %v1327
    %v1524 = vpack.c.bf16 %v1330, %v1329
    %v1525 = vpack.c.bf16 %v1332, %v1331
    %v1526 = vpack.c.bf16 %v1334, %v1333
    %v1527 = vpack.c.bf16 %v1336, %v1335
    %v1528 = vpack.c.bf16 %v1338, %v1337
    %v1529 = vpack.c.bf16 %v1340, %v1339
    %v1530 = vpack.c.bf16 %v1342, %v1341
    %v1531 = vpack.c.bf16 %v1344, %v1343
    %v1532 = vpack.c.bf16 %v1346, %v1345
    %v1533 = vpack.c.bf16 %v1348, %v1347
    %v1534 = vpack.c.bf16 %v1350, %v1349
    %v1535 = vpack.c.bf16 %v1352, %v1351
    %v1536 = vpack.c.bf16 %v1354, %v1353
    %v1537 = vpack.c.bf16 %v1356, %v1355
    %v1538 = vpack.c.bf16 %v1358, %v1357
    %v1539 = vpack.c.bf16 %v1360, %v1359
    %v1540 = vpack.c.bf16 %v1362, %v1361
    %v1541 = vpack.c.bf16 %v1364, %v1363
    %v1542 = vpack.c.bf16 %v1366, %v1365
    %v1543 = vpack.c.bf16 %v1368, %v1367
    %v1544 = vpack.c.bf16 %v1370, %v1369
    %v1545 = vpack.c.bf16 %v1372, %v1371
    %v1546 = vpack.c.bf16 %v1374, %v1373
    %v1547 = vpack.c.bf16 %v1376, %v1375
    %v1548 = vpack.c.bf16 %v1378, %v1377
    %v1549 = vpack.c.bf16 %v1380, %v1379
    %v1550 = vpack.c.bf16 %v1382, %v1381
    %v1551 = vpack.c.bf16 %v1384, %v1383
    %v1552 = vpack.c.bf16 %v1386, %v1385
    %v1553 = vpack.c.bf16 %v1388, %v1387
    %v1554 = vpack.c.bf16 %v1390, %v1389
    %v1555 = vpack.c.bf16 %v1392, %v1391
    %v1556 = vpack.c.bf16 %v1394, %v1393
    %v1557 = vpack.c.bf16 %v1396, %v1395
    %v1558 = vpack.c.bf16 %v1398, %v1397
    %v1559 = vpack.c.bf16 %v1400, %v1399
    %v1560 = vpack.c.bf16 %v1402, %v1401
    %v1561 = vpack.c.bf16 %v1404, %v1403
    %v1562 = vpack.c.bf16 %v1406, %v1405
    %v1563 = vpack.c.bf16 %v1408, %v1407
    %v1564 = vpack.c.bf16 %v1410, %v1409
    %v1565 = vpack.c.bf16 %v1412, %v1411
    %v1566 = vpack.c.bf16 %v1414, %v1413
    %v1567 = vpack.c.bf16 %v1416, %v1415
    %v1568 = vpack.c.bf16 %v1418, %v1417
    %v1569 = vpack.c.bf16 %v1420, %v1419
    %v1570 = vpack.c.bf16 %v1422, %v1421
    %v1571 = vpack.c.bf16 %v1424, %v1423
    %v1572 = vpack.c.bf16 %v1426, %v1425
    %v1573 = vpack.c.bf16 %v1428, %v1427
    %v1574 = vpack.c.bf16 %v1430, %v1429
    %v1575 = vpack.c.bf16 %v1432, %v1431
    %v1576 = vpack.c.bf16 %v1434, %v1433
    %v1577 = vpack.c.bf16 %v1436, %v1435
    %v1578 = vpack.c.bf16 %v1438, %v1437
    %v1579 = vpack.c.bf16 %v1440, %v1439
    %v1580 = vpack.c.bf16 %v1442, %v1441
    %v1581 = vpack.c.bf16 %v1444, %v1443
    %v1582 = vpack.c.bf16 %v1446, %v1445
    %v1583 = vpack.c.bf16 %v1448, %v1447
    %v1584 = vpack.c.bf16 %v1450, %v1449
    %v1585 = vpack.c.bf16 %v1452, %v1451
    %v1586 = vpack.c.bf16 %v1454, %v1453
    %v1587 = vpack.c.bf16 %v1456, %v1455
    %v1588 = vpack.c.bf16 %v1458, %v1457
    %v1589 = vpack.c.bf16 %v1460, %v1459
    %v1590 = vpack.c.bf16 %v1462, %v1461
    %v1607 = vcombine.low %v161, %v163
    %v1608 = vcombine.high %v161, %v163
    %v1609 = vcombine.low %v165, %v167
    %v1610 = vcombine.high %v165, %v167
    %v1611 = vcombine.low %v169, %v171
    %v1612 = vcombine.high %v169, %v171
    %v1613 = vcombine.low %v173, %v175
    %v1614 = vcombine.high %v173, %v175
    %v1616 = vunpack.c.l.s4 1966171168
    %v1617 = vunpack.c.0.s8 %v1616
    %v1618 = vlaneseq
    %v1619 = vshrl.u32 %v1618, 7
    %v1620 = vsub.s32 %v1617, %v1619
    %v1621 = vrot.slane %v1607, %v1620
    %v1623 = vunpack.c.l.s4 1966171168
    %v1624 = vunpack.c.0.s8 %v1623
    %v1625 = vlaneseq
    %v1626 = vshrl.u32 %v1625, 7
    %v1627 = vsub.s32 %v1624, %v1626
    %v1628 = vrot.slane %v1608, %v1627
    %v1630 = vunpack.c.l.s4 1966171168
    %v1631 = vunpack.c.0.s8 %v1630
    %v1632 = vlaneseq
    %v1633 = vshrl.u32 %v1632, 7
    %v1634 = vsub.s32 %v1631, %v1633
    %v1635 = vrot.slane %v1609, %v1634
    %v1637 = vunpack.c.l.s4 1966171168
    %v1638 = vunpack.c.0.s8 %v1637
    %v1639 = vlaneseq
    %v1640 = vshrl.u32 %v1639, 7
    %v1641 = vsub.s32 %v1638, %v1640
    %v1642 = vrot.slane %v1610, %v1641
    %v1644 = vunpack.c.l.s4 1966171168
    %v1645 = vunpack.c.0.s8 %v1644
    %v1646 = vlaneseq
    %v1647 = vshrl.u32 %v1646, 7
    %v1648 = vsub.s32 %v1645, %v1647
    %v1649 = vrot.slane %v1611, %v1648
    %v1651 = vunpack.c.l.s4 1966171168
    %v1652 = vunpack.c.0.s8 %v1651
    %v1653 = vlaneseq
    %v1654 = vshrl.u32 %v1653, 7
    %v1655 = vsub.s32 %v1652, %v1654
    %v1656 = vrot.slane %v1612, %v1655
    %v1658 = vunpack.c.l.s4 1966171168
    %v1659 = vunpack.c.0.s8 %v1658
    %v1660 = vlaneseq
    %v1661 = vshrl.u32 %v1660, 7
    %v1662 = vsub.s32 %v1659, %v1661
    %v1663 = vrot.slane %v1613, %v1662
    %v1665 = vunpack.c.l.s4 1966171168
    %v1666 = vunpack.c.0.s8 %v1665
    %v1667 = vlaneseq
    %v1668 = vshrl.u32 %v1667, 7
    %v1669 = vsub.s32 %v1666, %v1668
    %v1670 = vrot.slane %v1614, %v1669
    %v1671 = vcombine.low %v1621, %v1635
    %v1672 = vcombine.high %v1621, %v1635
    %v1673 = vcombine.low %v1628, %v1642
    %v1674 = vcombine.high %v1628, %v1642
    %v1675 = vcombine.low %v1649, %v1663
    %v1676 = vcombine.high %v1649, %v1663
    %v1677 = vcombine.low %v1656, %v1670
    %v1678 = vcombine.high %v1656, %v1670
    %v1680 = vunpack.c.l.s4 1966171168
    %v1681 = vunpack.c.0.s8 %v1680
    %v1682 = vlaneseq
    %v1683 = vshrl.u32 %v1682, 7
    %v1684 = vsub.s32 %v1681, %v1683
    %v1685 = vrot.slane %v1671, %v1684
    %v1687 = vunpack.c.l.s4 1966171168
    %v1688 = vunpack.c.0.s8 %v1687
    %v1689 = vlaneseq
    %v1690 = vshrl.u32 %v1689, 7
    %v1691 = vsub.s32 %v1688, %v1690
    %v1692 = vrot.slane %v1673, %v1691
    %v1694 = vunpack.c.l.s4 1966171168
    %v1695 = vunpack.c.0.s8 %v1694
    %v1696 = vlaneseq
    %v1697 = vshrl.u32 %v1696, 7
    %v1698 = vsub.s32 %v1695, %v1697
    %v1699 = vrot.slane %v1672, %v1698
    %v1701 = vunpack.c.l.s4 1966171168
    %v1702 = vunpack.c.0.s8 %v1701
    %v1703 = vlaneseq
    %v1704 = vshrl.u32 %v1703, 7
    %v1705 = vsub.s32 %v1702, %v1704
    %v1706 = vrot.slane %v1674, %v1705
    %v1708 = vunpack.c.l.s4 1966171168
    %v1709 = vunpack.c.0.s8 %v1708
    %v1710 = vlaneseq
    %v1711 = vshrl.u32 %v1710, 7
    %v1712 = vsub.s32 %v1709, %v1711
    %v1713 = vrot.slane %v1675, %v1712
    %v1715 = vunpack.c.l.s4 1966171168
    %v1716 = vunpack.c.0.s8 %v1715
    %v1717 = vlaneseq
    %v1718 = vshrl.u32 %v1717, 7
    %v1719 = vsub.s32 %v1716, %v1718
    %v1720 = vrot.slane %v1677, %v1719
    %v1722 = vunpack.c.l.s4 1966171168
    %v1723 = vunpack.c.0.s8 %v1722
    %v1724 = vlaneseq
    %v1725 = vshrl.u32 %v1724, 7
    %v1726 = vsub.s32 %v1723, %v1725
    %v1727 = vrot.slane %v1676, %v1726
    %v1729 = vunpack.c.l.s4 1966171168
    %v1730 = vunpack.c.0.s8 %v1729
    %v1731 = vlaneseq
    %v1732 = vshrl.u32 %v1731, 7
    %v1733 = vsub.s32 %v1730, %v1732
    %v1734 = vrot.slane %v1678, %v1733
    %v1735 = vcombine.low %v1685, %v1713
    %v1736 = vcombine.high %v1685, %v1713
    %v1737 = vcombine.low %v1692, %v1720
    %v1738 = vcombine.high %v1692, %v1720
    %v1739 = vcombine.low %v1699, %v1727
    %v1740 = vcombine.high %v1699, %v1727
    %v1741 = vcombine.low %v1706, %v1734
    %v1742 = vcombine.high %v1706, %v1734
    %v1743 = vcombine.low %v162, %v164
    %v1744 = vcombine.high %v162, %v164
    %v1745 = vcombine.low %v166, %v168
    %v1746 = vcombine.high %v166, %v168
    %v1747 = vcombine.low %v170, %v172
    %v1748 = vcombine.high %v170, %v172
    %v1749 = vcombine.low %v174, %v176
    %v1750 = vcombine.high %v174, %v176
    %v1752 = vunpack.c.l.s4 1966171168
    %v1753 = vunpack.c.0.s8 %v1752
    %v1754 = vlaneseq
    %v1755 = vshrl.u32 %v1754, 7
    %v1756 = vsub.s32 %v1753, %v1755
    %v1757 = vrot.slane %v1743, %v1756
    %v1759 = vunpack.c.l.s4 1966171168
    %v1760 = vunpack.c.0.s8 %v1759
    %v1761 = vlaneseq
    %v1762 = vshrl.u32 %v1761, 7
    %v1763 = vsub.s32 %v1760, %v1762
    %v1764 = vrot.slane %v1744, %v1763
    %v1766 = vunpack.c.l.s4 1966171168
    %v1767 = vunpack.c.0.s8 %v1766
    %v1768 = vlaneseq
    %v1769 = vshrl.u32 %v1768, 7
    %v1770 = vsub.s32 %v1767, %v1769
    %v1771 = vrot.slane %v1745, %v1770
    %v1773 = vunpack.c.l.s4 1966171168
    %v1774 = vunpack.c.0.s8 %v1773
    %v1775 = vlaneseq
    %v1776 = vshrl.u32 %v1775, 7
    %v1777 = vsub.s32 %v1774, %v1776
    %v1778 = vrot.slane %v1746, %v1777
    %v1780 = vunpack.c.l.s4 1966171168
    %v1781 = vunpack.c.0.s8 %v1780
    %v1782 = vlaneseq
    %v1783 = vshrl.u32 %v1782, 7
    %v1784 = vsub.s32 %v1781, %v1783
    %v1785 = vrot.slane %v1747, %v1784
    %v1787 = vunpack.c.l.s4 1966171168
    %v1788 = vunpack.c.0.s8 %v1787
    %v1789 = vlaneseq
    %v1790 = vshrl.u32 %v1789, 7
    %v1791 = vsub.s32 %v1788, %v1790
    %v1792 = vrot.slane %v1748, %v1791
    %v1794 = vunpack.c.l.s4 1966171168
    %v1795 = vunpack.c.0.s8 %v1794
    %v1796 = vlaneseq
    %v1797 = vshrl.u32 %v1796, 7
    %v1798 = vsub.s32 %v1795, %v1797
    %v1799 = vrot.slane %v1749, %v1798
    %v1801 = vunpack.c.l.s4 1966171168
    %v1802 = vunpack.c.0.s8 %v1801
    %v1803 = vlaneseq
    %v1804 = vshrl.u32 %v1803, 7
    %v1805 = vsub.s32 %v1802, %v1804
    %v1806 = vrot.slane %v1750, %v1805
    %v1807 = vcombine.low %v1757, %v1771
    %v1808 = vcombine.high %v1757, %v1771
    %v1809 = vcombine.low %v1764, %v1778
    %v1810 = vcombine.high %v1764, %v1778
    %v1811 = vcombine.low %v1785, %v1799
    %v1812 = vcombine.high %v1785, %v1799
    %v1813 = vcombine.low %v1792, %v1806
    %v1814 = vcombine.high %v1792, %v1806
    %v1816 = vunpack.c.l.s4 1966171168
    %v1817 = vunpack.c.0.s8 %v1816
    %v1818 = vlaneseq
    %v1819 = vshrl.u32 %v1818, 7
    %v1820 = vsub.s32 %v1817, %v1819
    %v1821 = vrot.slane %v1807, %v1820
    %v1823 = vunpack.c.l.s4 1966171168
    %v1824 = vunpack.c.0.s8 %v1823
    %v1825 = vlaneseq
    %v1826 = vshrl.u32 %v1825, 7
    %v1827 = vsub.s32 %v1824, %v1826
    %v1828 = vrot.slane %v1809, %v1827
    %v1830 = vunpack.c.l.s4 1966171168
    %v1831 = vunpack.c.0.s8 %v1830
    %v1832 = vlaneseq
    %v1833 = vshrl.u32 %v1832, 7
    %v1834 = vsub.s32 %v1831, %v1833
    %v1835 = vrot.slane %v1808, %v1834
    %v1837 = vunpack.c.l.s4 1966171168
    %v1838 = vunpack.c.0.s8 %v1837
    %v1839 = vlaneseq
    %v1840 = vshrl.u32 %v1839, 7
    %v1841 = vsub.s32 %v1838, %v1840
    %v1842 = vrot.slane %v1810, %v1841
    %v1844 = vunpack.c.l.s4 1966171168
    %v1845 = vunpack.c.0.s8 %v1844
    %v1846 = vlaneseq
    %v1847 = vshrl.u32 %v1846, 7
    %v1848 = vsub.s32 %v1845, %v1847
    %v1849 = vrot.slane %v1811, %v1848
    %v1851 = vunpack.c.l.s4 1966171168
    %v1852 = vunpack.c.0.s8 %v1851
    %v1853 = vlaneseq
    %v1854 = vshrl.u32 %v1853, 7
    %v1855 = vsub.s32 %v1852, %v1854
    %v1856 = vrot.slane %v1813, %v1855
    %v1858 = vunpack.c.l.s4 1966171168
    %v1859 = vunpack.c.0.s8 %v1858
    %v1860 = vlaneseq
    %v1861 = vshrl.u32 %v1860, 7
    %v1862 = vsub.s32 %v1859, %v1861
    %v1863 = vrot.slane %v1812, %v1862
    %v1865 = vunpack.c.l.s4 1966171168
    %v1866 = vunpack.c.0.s8 %v1865
    %v1867 = vlaneseq
    %v1868 = vshrl.u32 %v1867, 7
    %v1869 = vsub.s32 %v1866, %v1868
    %v1870 = vrot.slane %v1814, %v1869
    %v1871 = vcombine.low %v1821, %v1849
    %v1872 = vcombine.high %v1821, %v1849
    %v1873 = vcombine.low %v1828, %v1856
    %v1874 = vcombine.high %v1828, %v1856
    %v1875 = vcombine.low %v1835, %v1863
    %v1876 = vcombine.high %v1835, %v1863
    %v1877 = vcombine.low %v1842, %v1870
    %v1878 = vcombine.high %v1842, %v1870
    %v1895 = vpack.c.bf16 %v1735, %v1735
    %v1896 = vpack.c.bf16 %v1739, %v1739
    %v1897 = vpack.c.bf16 %v1736, %v1736
    %v1898 = vpack.c.bf16 %v1740, %v1740
    %v1899 = vpack.c.bf16 %v1737, %v1737
    %v1900 = vpack.c.bf16 %v1741, %v1741
    %v1901 = vpack.c.bf16 %v1738, %v1738
    %v1902 = vpack.c.bf16 %v1742, %v1742
    %v1903 = vpack.c.bf16 %v1871, %v1871
    %v1904 = vpack.c.bf16 %v1875, %v1875
    %v1905 = vpack.c.bf16 %v1872, %v1872
    %v1906 = vpack.c.bf16 %v1876, %v1876
    %v1907 = vpack.c.bf16 %v1873, %v1873
    %v1908 = vpack.c.bf16 %v1877, %v1877
    %v1909 = vpack.c.bf16 %v1874, %v1874
    %v1910 = vpack.c.bf16 %v1878, %v1878
    %v1911 = vunpack.c.l.bf16 %v1895
    %v1912 = vunpack.c.l.bf16 %v1896
    %v1913 = vunpack.c.l.bf16 %v1897
    %v1914 = vunpack.c.l.bf16 %v1898
    %v1915 = vunpack.c.l.bf16 %v1899
    %v1916 = vunpack.c.l.bf16 %v1900
    %v1917 = vunpack.c.l.bf16 %v1901
    %v1918 = vunpack.c.l.bf16 %v1902
    %v1919 = vunpack.c.l.bf16 %v1903
    %v1920 = vunpack.c.l.bf16 %v1904
    %v1921 = vunpack.c.l.bf16 %v1905
    %v1922 = vunpack.c.l.bf16 %v1906
    %v1923 = vunpack.c.l.bf16 %v1907
    %v1924 = vunpack.c.l.bf16 %v1908
    %v1925 = vunpack.c.l.bf16 %v1909
    %v1926 = vunpack.c.l.bf16 %v1910
    %v1943 = vcombine.low %v1911, %v1912
    %v1944 = vcombine.high %v1911, %v1912
    %v1945 = vcombine.low %v1913, %v1914
    %v1946 = vcombine.high %v1913, %v1914
    %v1947 = vcombine.low %v1915, %v1916
    %v1948 = vcombine.high %v1915, %v1916
    %v1949 = vcombine.low %v1917, %v1918
    %v1950 = vcombine.high %v1917, %v1918
    %v1952 = vunpack.c.l.s4 1966171168
    %v1953 = vunpack.c.0.s8 %v1952
    %v1954 = vlaneseq
    %v1955 = vshrl.u32 %v1954, 7
    %v1956 = vsub.s32 %v1953, %v1955
    %v1957 = vrot.slane %v1943, %v1956
    %v1959 = vunpack.c.l.s4 1966171168
    %v1960 = vunpack.c.0.s8 %v1959
    %v1961 = vlaneseq
    %v1962 = vshrl.u32 %v1961, 7
    %v1963 = vsub.s32 %v1960, %v1962
    %v1964 = vrot.slane %v1944, %v1963
    %v1966 = vunpack.c.l.s4 1966171168
    %v1967 = vunpack.c.0.s8 %v1966
    %v1968 = vlaneseq
    %v1969 = vshrl.u32 %v1968, 7
    %v1970 = vsub.s32 %v1967, %v1969
    %v1971 = vrot.slane %v1945, %v1970
    %v1973 = vunpack.c.l.s4 1966171168
    %v1974 = vunpack.c.0.s8 %v1973
    %v1975 = vlaneseq
    %v1976 = vshrl.u32 %v1975, 7
    %v1977 = vsub.s32 %v1974, %v1976
    %v1978 = vrot.slane %v1946, %v1977
    %v1980 = vunpack.c.l.s4 1966171168
    %v1981 = vunpack.c.0.s8 %v1980
    %v1982 = vlaneseq
    %v1983 = vshrl.u32 %v1982, 7
    %v1984 = vsub.s32 %v1981, %v1983
    %v1985 = vrot.slane %v1947, %v1984
    %v1987 = vunpack.c.l.s4 1966171168
    %v1988 = vunpack.c.0.s8 %v1987
    %v1989 = vlaneseq
    %v1990 = vshrl.u32 %v1989, 7
    %v1991 = vsub.s32 %v1988, %v1990
    %v1992 = vrot.slane %v1948, %v1991
    %v1994 = vunpack.c.l.s4 1966171168
    %v1995 = vunpack.c.0.s8 %v1994
    %v1996 = vlaneseq
    %v1997 = vshrl.u32 %v1996, 7
    %v1998 = vsub.s32 %v1995, %v1997
    %v1999 = vrot.slane %v1949, %v1998
    %v2001 = vunpack.c.l.s4 1966171168
    %v2002 = vunpack.c.0.s8 %v2001
    %v2003 = vlaneseq
    %v2004 = vshrl.u32 %v2003, 7
    %v2005 = vsub.s32 %v2002, %v2004
    %v2006 = vrot.slane %v1950, %v2005
    %v2007 = vcombine.low %v1957, %v1971
    %v2008 = vcombine.high %v1957, %v1971
    %v2009 = vcombine.low %v1964, %v1978
    %v2010 = vcombine.high %v1964, %v1978
    %v2011 = vcombine.low %v1985, %v1999
    %v2012 = vcombine.high %v1985, %v1999
    %v2013 = vcombine.low %v1992, %v2006
    %v2014 = vcombine.high %v1992, %v2006
    %v2016 = vunpack.c.l.s4 1966171168
    %v2017 = vunpack.c.0.s8 %v2016
    %v2018 = vlaneseq
    %v2019 = vshrl.u32 %v2018, 7
    %v2020 = vsub.s32 %v2017, %v2019
    %v2021 = vrot.slane %v2007, %v2020
    %v2023 = vunpack.c.l.s4 1966171168
    %v2024 = vunpack.c.0.s8 %v2023
    %v2025 = vlaneseq
    %v2026 = vshrl.u32 %v2025, 7
    %v2027 = vsub.s32 %v2024, %v2026
    %v2028 = vrot.slane %v2009, %v2027
    %v2030 = vunpack.c.l.s4 1966171168
    %v2031 = vunpack.c.0.s8 %v2030
    %v2032 = vlaneseq
    %v2033 = vshrl.u32 %v2032, 7
    %v2034 = vsub.s32 %v2031, %v2033
    %v2035 = vrot.slane %v2008, %v2034
    %v2037 = vunpack.c.l.s4 1966171168
    %v2038 = vunpack.c.0.s8 %v2037
    %v2039 = vlaneseq
    %v2040 = vshrl.u32 %v2039, 7
    %v2041 = vsub.s32 %v2038, %v2040
    %v2042 = vrot.slane %v2010, %v2041
    %v2044 = vunpack.c.l.s4 1966171168
    %v2045 = vunpack.c.0.s8 %v2044
    %v2046 = vlaneseq
    %v2047 = vshrl.u32 %v2046, 7
    %v2048 = vsub.s32 %v2045, %v2047
    %v2049 = vrot.slane %v2011, %v2048
    %v2051 = vunpack.c.l.s4 1966171168
    %v2052 = vunpack.c.0.s8 %v2051
    %v2053 = vlaneseq
    %v2054 = vshrl.u32 %v2053, 7
    %v2055 = vsub.s32 %v2052, %v2054
    %v2056 = vrot.slane %v2013, %v2055
    %v2058 = vunpack.c.l.s4 1966171168
    %v2059 = vunpack.c.0.s8 %v2058
    %v2060 = vlaneseq
    %v2061 = vshrl.u32 %v2060, 7
    %v2062 = vsub.s32 %v2059, %v2061
    %v2063 = vrot.slane %v2012, %v2062
    %v2065 = vunpack.c.l.s4 1966171168
    %v2066 = vunpack.c.0.s8 %v2065
    %v2067 = vlaneseq
    %v2068 = vshrl.u32 %v2067, 7
    %v2069 = vsub.s32 %v2066, %v2068
    %v2070 = vrot.slane %v2014, %v2069
    %v2071 = vcombine.low %v2021, %v2049
    %v2072 = vcombine.high %v2021, %v2049
    %v2073 = vcombine.low %v2028, %v2056
    %v2074 = vcombine.high %v2028, %v2056
    %v2075 = vcombine.low %v2035, %v2063
    %v2076 = vcombine.high %v2035, %v2063
    %v2077 = vcombine.low %v2042, %v2070
    %v2078 = vcombine.high %v2042, %v2070
    %v2079 = vcombine.low %v1919, %v1920
    %v2080 = vcombine.high %v1919, %v1920
    %v2081 = vcombine.low %v1921, %v1922
    %v2082 = vcombine.high %v1921, %v1922
    %v2083 = vcombine.low %v1923, %v1924
    %v2084 = vcombine.high %v1923, %v1924
    %v2085 = vcombine.low %v1925, %v1926
    %v2086 = vcombine.high %v1925, %v1926
    %v2088 = vunpack.c.l.s4 1966171168
    %v2089 = vunpack.c.0.s8 %v2088
    %v2090 = vlaneseq
    %v2091 = vshrl.u32 %v2090, 7
    %v2092 = vsub.s32 %v2089, %v2091
    %v2093 = vrot.slane %v2079, %v2092
    %v2095 = vunpack.c.l.s4 1966171168
    %v2096 = vunpack.c.0.s8 %v2095
    %v2097 = vlaneseq
    %v2098 = vshrl.u32 %v2097, 7
    %v2099 = vsub.s32 %v2096, %v2098
    %v2100 = vrot.slane %v2080, %v2099
    %v2102 = vunpack.c.l.s4 1966171168
    %v2103 = vunpack.c.0.s8 %v2102
    %v2104 = vlaneseq
    %v2105 = vshrl.u32 %v2104, 7
    %v2106 = vsub.s32 %v2103, %v2105
    %v2107 = vrot.slane %v2081, %v2106
    %v2109 = vunpack.c.l.s4 1966171168
    %v2110 = vunpack.c.0.s8 %v2109
    %v2111 = vlaneseq
    %v2112 = vshrl.u32 %v2111, 7
    %v2113 = vsub.s32 %v2110, %v2112
    %v2114 = vrot.slane %v2082, %v2113
    %v2116 = vunpack.c.l.s4 1966171168
    %v2117 = vunpack.c.0.s8 %v2116
    %v2118 = vlaneseq
    %v2119 = vshrl.u32 %v2118, 7
    %v2120 = vsub.s32 %v2117, %v2119
    %v2121 = vrot.slane %v2083, %v2120
    %v2123 = vunpack.c.l.s4 1966171168
    %v2124 = vunpack.c.0.s8 %v2123
    %v2125 = vlaneseq
    %v2126 = vshrl.u32 %v2125, 7
    %v2127 = vsub.s32 %v2124, %v2126
    %v2128 = vrot.slane %v2084, %v2127
    %v2130 = vunpack.c.l.s4 1966171168
    %v2131 = vunpack.c.0.s8 %v2130
    %v2132 = vlaneseq
    %v2133 = vshrl.u32 %v2132, 7
    %v2134 = vsub.s32 %v2131, %v2133
    %v2135 = vrot.slane %v2085, %v2134
    %v2137 = vunpack.c.l.s4 1966171168
    %v2138 = vunpack.c.0.s8 %v2137
    %v2139 = vlaneseq
    %v2140 = vshrl.u32 %v2139, 7
    %v2141 = vsub.s32 %v2138, %v2140
    %v2142 = vrot.slane %v2086, %v2141
    %v2143 = vcombine.low %v2093, %v2107
    %v2144 = vcombine.high %v2093, %v2107
    %v2145 = vcombine.low %v2100, %v2114
    %v2146 = vcombine.high %v2100, %v2114
    %v2147 = vcombine.low %v2121, %v2135
    %v2148 = vcombine.high %v2121, %v2135
    %v2149 = vcombine.low %v2128, %v2142
    %v2150 = vcombine.high %v2128, %v2142
    %v2152 = vunpack.c.l.s4 1966171168
    %v2153 = vunpack.c.0.s8 %v2152
    %v2154 = vlaneseq
    %v2155 = vshrl.u32 %v2154, 7
    %v2156 = vsub.s32 %v2153, %v2155
    %v2157 = vrot.slane %v2143, %v2156
    %v2159 = vunpack.c.l.s4 1966171168
    %v2160 = vunpack.c.0.s8 %v2159
    %v2161 = vlaneseq
    %v2162 = vshrl.u32 %v2161, 7
    %v2163 = vsub.s32 %v2160, %v2162
    %v2164 = vrot.slane %v2145, %v2163
    %v2166 = vunpack.c.l.s4 1966171168
    %v2167 = vunpack.c.0.s8 %v2166
    %v2168 = vlaneseq
    %v2169 = vshrl.u32 %v2168, 7
    %v2170 = vsub.s32 %v2167, %v2169
    %v2171 = vrot.slane %v2144, %v2170
    %v2173 = vunpack.c.l.s4 1966171168
    %v2174 = vunpack.c.0.s8 %v2173
    %v2175 = vlaneseq
    %v2176 = vshrl.u32 %v2175, 7
    %v2177 = vsub.s32 %v2174, %v2176
    %v2178 = vrot.slane %v2146, %v2177
    %v2180 = vunpack.c.l.s4 1966171168
    %v2181 = vunpack.c.0.s8 %v2180
    %v2182 = vlaneseq
    %v2183 = vshrl.u32 %v2182, 7
    %v2184 = vsub.s32 %v2181, %v2183
    %v2185 = vrot.slane %v2147, %v2184
    %v2187 = vunpack.c.l.s4 1966171168
    %v2188 = vunpack.c.0.s8 %v2187
    %v2189 = vlaneseq
    %v2190 = vshrl.u32 %v2189, 7
    %v2191 = vsub.s32 %v2188, %v2190
    %v2192 = vrot.slane %v2149, %v2191
    %v2194 = vunpack.c.l.s4 1966171168
    %v2195 = vunpack.c.0.s8 %v2194
    %v2196 = vlaneseq
    %v2197 = vshrl.u32 %v2196, 7
    %v2198 = vsub.s32 %v2195, %v2197
    %v2199 = vrot.slane %v2148, %v2198
    %v2201 = vunpack.c.l.s4 1966171168
    %v2202 = vunpack.c.0.s8 %v2201
    %v2203 = vlaneseq
    %v2204 = vshrl.u32 %v2203, 7
    %v2205 = vsub.s32 %v2202, %v2204
    %v2206 = vrot.slane %v2150, %v2205
    %v2207 = vcombine.low %v2157, %v2185
    %v2208 = vcombine.high %v2157, %v2185
    %v2209 = vcombine.low %v2164, %v2192
    %v2210 = vcombine.high %v2164, %v2192
    %v2211 = vcombine.low %v2171, %v2199
    %v2212 = vcombine.high %v2171, %v2199
    %v2213 = vcombine.low %v2178, %v2206
    %v2214 = vcombine.high %v2178, %v2206
    %v2231 = vsub.f32 %v161, %v2071
    %v2232 = vsub.f32 %v162, %v2207
    %v2233 = vsub.f32 %v163, %v2075
    %v2234 = vsub.f32 %v164, %v2211
    %v2235 = vsub.f32 %v165, %v2072
    %v2236 = vsub.f32 %v166, %v2208
    %v2237 = vsub.f32 %v167, %v2076
    %v2238 = vsub.f32 %v168, %v2212
    %v2239 = vsub.f32 %v169, %v2073
    %v2240 = vsub.f32 %v170, %v2209
    %v2241 = vsub.f32 %v171, %v2077
    %v2242 = vsub.f32 %v172, %v2213
    %v2243 = vsub.f32 %v173, %v2074
    %v2244 = vsub.f32 %v174, %v2210
    %v2245 = vsub.f32 %v175, %v2078
    %v2246 = vsub.f32 %v176, %v2214
    %v2263 = vcombine.low %v2231, %v2233
    %v2264 = vcombine.high %v2231, %v2233
    %v2265 = vcombine.low %v2235, %v2237
    %v2266 = vcombine.high %v2235, %v2237
    %v2267 = vcombine.low %v2239, %v2241
    %v2268 = vcombine.high %v2239, %v2241
    %v2269 = vcombine.low %v2243, %v2245
    %v2270 = vcombine.high %v2243, %v2245
    %v2272 = vunpack.c.l.s4 1966171168
    %v2273 = vunpack.c.0.s8 %v2272
    %v2274 = vlaneseq
    %v2275 = vshrl.u32 %v2274, 7
    %v2276 = vsub.s32 %v2273, %v2275
    %v2277 = vrot.slane %v2263, %v2276
    %v2279 = vunpack.c.l.s4 1966171168
    %v2280 = vunpack.c.0.s8 %v2279
    %v2281 = vlaneseq
    %v2282 = vshrl.u32 %v2281, 7
    %v2283 = vsub.s32 %v2280, %v2282
    %v2284 = vrot.slane %v2264, %v2283
    %v2286 = vunpack.c.l.s4 1966171168
    %v2287 = vunpack.c.0.s8 %v2286
    %v2288 = vlaneseq
    %v2289 = vshrl.u32 %v2288, 7
    %v2290 = vsub.s32 %v2287, %v2289
    %v2291 = vrot.slane %v2265, %v2290
    %v2293 = vunpack.c.l.s4 1966171168
    %v2294 = vunpack.c.0.s8 %v2293
    %v2295 = vlaneseq
    %v2296 = vshrl.u32 %v2295, 7
    %v2297 = vsub.s32 %v2294, %v2296
    %v2298 = vrot.slane %v2266, %v2297
    %v2300 = vunpack.c.l.s4 1966171168
    %v2301 = vunpack.c.0.s8 %v2300
    %v2302 = vlaneseq
    %v2303 = vshrl.u32 %v2302, 7
    %v2304 = vsub.s32 %v2301, %v2303
    %v2305 = vrot.slane %v2267, %v2304
    %v2307 = vunpack.c.l.s4 1966171168
    %v2308 = vunpack.c.0.s8 %v2307
    %v2309 = vlaneseq
    %v2310 = vshrl.u32 %v2309, 7
    %v2311 = vsub.s32 %v2308, %v2310
    %v2312 = vrot.slane %v2268, %v2311
    %v2314 = vunpack.c.l.s4 1966171168
    %v2315 = vunpack.c.0.s8 %v2314
    %v2316 = vlaneseq
    %v2317 = vshrl.u32 %v2316, 7
    %v2318 = vsub.s32 %v2315, %v2317
    %v2319 = vrot.slane %v2269, %v2318
    %v2321 = vunpack.c.l.s4 1966171168
    %v2322 = vunpack.c.0.s8 %v2321
    %v2323 = vlaneseq
    %v2324 = vshrl.u32 %v2323, 7
    %v2325 = vsub.s32 %v2322, %v2324
    %v2326 = vrot.slane %v2270, %v2325
    %v2327 = vcombine.low %v2277, %v2291
    %v2328 = vcombine.high %v2277, %v2291
    %v2329 = vcombine.low %v2284, %v2298
    %v2330 = vcombine.high %v2284, %v2298
    %v2331 = vcombine.low %v2305, %v2319
    %v2332 = vcombine.high %v2305, %v2319
    %v2333 = vcombine.low %v2312, %v2326
    %v2334 = vcombine.high %v2312, %v2326
    %v2336 = vunpack.c.l.s4 1966171168
    %v2337 = vunpack.c.0.s8 %v2336
    %v2338 = vlaneseq
    %v2339 = vshrl.u32 %v2338, 7
    %v2340 = vsub.s32 %v2337, %v2339
    %v2341 = vrot.slane %v2327, %v2340
    %v2343 = vunpack.c.l.s4 1966171168
    %v2344 = vunpack.c.0.s8 %v2343
    %v2345 = vlaneseq
    %v2346 = vshrl.u32 %v2345, 7
    %v2347 = vsub.s32 %v2344, %v2346
    %v2348 = vrot.slane %v2329, %v2347
    %v2350 = vunpack.c.l.s4 1966171168
    %v2351 = vunpack.c.0.s8 %v2350
    %v2352 = vlaneseq
    %v2353 = vshrl.u32 %v2352, 7
    %v2354 = vsub.s32 %v2351, %v2353
    %v2355 = vrot.slane %v2328, %v2354
    %v2357 = vunpack.c.l.s4 1966171168
    %v2358 = vunpack.c.0.s8 %v2357
    %v2359 = vlaneseq
    %v2360 = vshrl.u32 %v2359, 7
    %v2361 = vsub.s32 %v2358, %v2360
    %v2362 = vrot.slane %v2330, %v2361
    %v2364 = vunpack.c.l.s4 1966171168
    %v2365 = vunpack.c.0.s8 %v2364
    %v2366 = vlaneseq
    %v2367 = vshrl.u32 %v2366, 7
    %v2368 = vsub.s32 %v2365, %v2367
    %v2369 = vrot.slane %v2331, %v2368
    %v2371 = vunpack.c.l.s4 1966171168
    %v2372 = vunpack.c.0.s8 %v2371
    %v2373 = vlaneseq
    %v2374 = vshrl.u32 %v2373, 7
    %v2375 = vsub.s32 %v2372, %v2374
    %v2376 = vrot.slane %v2333, %v2375
    %v2378 = vunpack.c.l.s4 1966171168
    %v2379 = vunpack.c.0.s8 %v2378
    %v2380 = vlaneseq
    %v2381 = vshrl.u32 %v2380, 7
    %v2382 = vsub.s32 %v2379, %v2381
    %v2383 = vrot.slane %v2332, %v2382
    %v2385 = vunpack.c.l.s4 1966171168
    %v2386 = vunpack.c.0.s8 %v2385
    %v2387 = vlaneseq
    %v2388 = vshrl.u32 %v2387, 7
    %v2389 = vsub.s32 %v2386, %v2388
    %v2390 = vrot.slane %v2334, %v2389
    %v2391 = vcombine.low %v2341, %v2369
    %v2392 = vcombine.high %v2341, %v2369
    %v2393 = vcombine.low %v2348, %v2376
    %v2394 = vcombine.high %v2348, %v2376
    %v2395 = vcombine.low %v2355, %v2383
    %v2396 = vcombine.high %v2355, %v2383
    %v2397 = vcombine.low %v2362, %v2390
    %v2398 = vcombine.high %v2362, %v2390
    %v2399 = vcombine.low %v2232, %v2234
    %v2400 = vcombine.high %v2232, %v2234
    %v2401 = vcombine.low %v2236, %v2238
    %v2402 = vcombine.high %v2236, %v2238
    %v2403 = vcombine.low %v2240, %v2242
    %v2404 = vcombine.high %v2240, %v2242
    %v2405 = vcombine.low %v2244, %v2246
    %v2406 = vcombine.high %v2244, %v2246
    %v2408 = vunpack.c.l.s4 1966171168
    %v2409 = vunpack.c.0.s8 %v2408
    %v2410 = vlaneseq
    %v2411 = vshrl.u32 %v2410, 7
    %v2412 = vsub.s32 %v2409, %v2411
    %v2413 = vrot.slane %v2399, %v2412
    %v2415 = vunpack.c.l.s4 1966171168
    %v2416 = vunpack.c.0.s8 %v2415
    %v2417 = vlaneseq
    %v2418 = vshrl.u32 %v2417, 7
    %v2419 = vsub.s32 %v2416, %v2418
    %v2420 = vrot.slane %v2400, %v2419
    %v2422 = vunpack.c.l.s4 1966171168
    %v2423 = vunpack.c.0.s8 %v2422
    %v2424 = vlaneseq
    %v2425 = vshrl.u32 %v2424, 7
    %v2426 = vsub.s32 %v2423, %v2425
    %v2427 = vrot.slane %v2401, %v2426
    %v2429 = vunpack.c.l.s4 1966171168
    %v2430 = vunpack.c.0.s8 %v2429
    %v2431 = vlaneseq
    %v2432 = vshrl.u32 %v2431, 7
    %v2433 = vsub.s32 %v2430, %v2432
    %v2434 = vrot.slane %v2402, %v2433
    %v2436 = vunpack.c.l.s4 1966171168
    %v2437 = vunpack.c.0.s8 %v2436
    %v2438 = vlaneseq
    %v2439 = vshrl.u32 %v2438, 7
    %v2440 = vsub.s32 %v2437, %v2439
    %v2441 = vrot.slane %v2403, %v2440
    %v2443 = vunpack.c.l.s4 1966171168
    %v2444 = vunpack.c.0.s8 %v2443
    %v2445 = vlaneseq
    %v2446 = vshrl.u32 %v2445, 7
    %v2447 = vsub.s32 %v2444, %v2446
    %v2448 = vrot.slane %v2404, %v2447
    %v2450 = vunpack.c.l.s4 1966171168
    %v2451 = vunpack.c.0.s8 %v2450
    %v2452 = vlaneseq
    %v2453 = vshrl.u32 %v2452, 7
    %v2454 = vsub.s32 %v2451, %v2453
    %v2455 = vrot.slane %v2405, %v2454
    %v2457 = vunpack.c.l.s4 1966171168
    %v2458 = vunpack.c.0.s8 %v2457
    %v2459 = vlaneseq
    %v2460 = vshrl.u32 %v2459, 7
    %v2461 = vsub.s32 %v2458, %v2460
    %v2462 = vrot.slane %v2406, %v2461
    %v2463 = vcombine.low %v2413, %v2427
    %v2464 = vcombine.high %v2413, %v2427
    %v2465 = vcombine.low %v2420, %v2434
    %v2466 = vcombine.high %v2420, %v2434
    %v2467 = vcombine.low %v2441, %v2455
    %v2468 = vcombine.high %v2441, %v2455
    %v2469 = vcombine.low %v2448, %v2462
    %v2470 = vcombine.high %v2448, %v2462
    %v2472 = vunpack.c.l.s4 1966171168
    %v2473 = vunpack.c.0.s8 %v2472
    %v2474 = vlaneseq
    %v2475 = vshrl.u32 %v2474, 7
    %v2476 = vsub.s32 %v2473, %v2475
    %v2477 = vrot.slane %v2463, %v2476
    %v2479 = vunpack.c.l.s4 1966171168
    %v2480 = vunpack.c.0.s8 %v2479
    %v2481 = vlaneseq
    %v2482 = vshrl.u32 %v2481, 7
    %v2483 = vsub.s32 %v2480, %v2482
    %v2484 = vrot.slane %v2465, %v2483
    %v2486 = vunpack.c.l.s4 1966171168
    %v2487 = vunpack.c.0.s8 %v2486
    %v2488 = vlaneseq
    %v2489 = vshrl.u32 %v2488, 7
    %v2490 = vsub.s32 %v2487, %v2489
    %v2491 = vrot.slane %v2464, %v2490
    %v2493 = vunpack.c.l.s4 1966171168
    %v2494 = vunpack.c.0.s8 %v2493
    %v2495 = vlaneseq
    %v2496 = vshrl.u32 %v2495, 7
    %v2497 = vsub.s32 %v2494, %v2496
    %v2498 = vrot.slane %v2466, %v2497
    %v2500 = vunpack.c.l.s4 1966171168
    %v2501 = vunpack.c.0.s8 %v2500
    %v2502 = vlaneseq
    %v2503 = vshrl.u32 %v2502, 7
    %v2504 = vsub.s32 %v2501, %v2503
    %v2505 = vrot.slane %v2467, %v2504
    %v2507 = vunpack.c.l.s4 1966171168
    %v2508 = vunpack.c.0.s8 %v2507
    %v2509 = vlaneseq
    %v2510 = vshrl.u32 %v2509, 7
    %v2511 = vsub.s32 %v2508, %v2510
    %v2512 = vrot.slane %v2469, %v2511
    %v2514 = vunpack.c.l.s4 1966171168
    %v2515 = vunpack.c.0.s8 %v2514
    %v2516 = vlaneseq
    %v2517 = vshrl.u32 %v2516, 7
    %v2518 = vsub.s32 %v2515, %v2517
    %v2519 = vrot.slane %v2468, %v2518
    %v2521 = vunpack.c.l.s4 1966171168
    %v2522 = vunpack.c.0.s8 %v2521
    %v2523 = vlaneseq
    %v2524 = vshrl.u32 %v2523, 7
    %v2525 = vsub.s32 %v2522, %v2524
    %v2526 = vrot.slane %v2470, %v2525
    %v2527 = vcombine.low %v2477, %v2505
    %v2528 = vcombine.high %v2477, %v2505
    %v2529 = vcombine.low %v2484, %v2512
    %v2530 = vcombine.high %v2484, %v2512
    %v2531 = vcombine.low %v2491, %v2519
    %v2532 = vcombine.high %v2491, %v2519
    %v2533 = vcombine.low %v2498, %v2526
    %v2534 = vcombine.high %v2498, %v2526
    %v2551 = vpack.c.bf16 %v2391, %v2391
    %v2552 = vpack.c.bf16 %v2395, %v2395
    %v2553 = vpack.c.bf16 %v2392, %v2392
    %v2554 = vpack.c.bf16 %v2396, %v2396
    %v2555 = vpack.c.bf16 %v2393, %v2393
    %v2556 = vpack.c.bf16 %v2397, %v2397
    %v2557 = vpack.c.bf16 %v2394, %v2394
    %v2558 = vpack.c.bf16 %v2398, %v2398
    %v2559 = vpack.c.bf16 %v2527, %v2527
    %v2560 = vpack.c.bf16 %v2531, %v2531
    %v2561 = vpack.c.bf16 %v2528, %v2528
    %v2562 = vpack.c.bf16 %v2532, %v2532
    %v2563 = vpack.c.bf16 %v2529, %v2529
    %v2564 = vpack.c.bf16 %v2533, %v2533
    %v2565 = vpack.c.bf16 %v2530, %v2530
    %v2566 = vpack.c.bf16 %v2534, %v2534
    %2567 = vmatprep.subr.bf16.mxu0 0
    %2568 = vmatpush1.bf16.msra.mxu0 %v1463
    %2569 = vmatprep.subr.bf16.mxu0 0
    %2570 = vmatpush1.bf16.msra.mxu0 %v1464
    %2571 = vmatprep.subr.bf16.mxu0 0
    %2572 = vmatpush1.bf16.msra.mxu0 %v1465
    %2573 = vmatprep.subr.bf16.mxu0 0
    %2574 = vmatpush1.bf16.msra.mxu0 %v1466
    %2575 = vmatprep.subr.bf16.mxu0 0
    %2576 = vmatpush1.bf16.msra.mxu0 %v1467
    %2577 = vmatprep.subr.bf16.mxu0 0
    %2578 = vmatpush1.bf16.msra.mxu0 %v1468
    %2579 = vmatprep.subr.bf16.mxu0 0
    %2580 = vmatpush1.bf16.msra.mxu0 %v1469
    %2581 = vmatprep.subr.bf16.mxu0 0
    %2582 = vmatpush1.bf16.msra.mxu0 %v1470
    %2583 = vmatprep.subr.bf16.mxu0 0
    %2584 = vmatpush1.bf16.msra.mxu0 %v1471
    %2585 = vmatprep.subr.bf16.mxu0 0
    %2586 = vmatpush1.bf16.msra.mxu0 %v1472
    %2587 = vmatprep.subr.bf16.mxu0 0
    %2588 = vmatpush1.bf16.msra.mxu0 %v1473
    %2589 = vmatprep.subr.bf16.mxu0 0
    %2590 = vmatpush1.bf16.msra.mxu0 %v1474
    %2591 = vmatprep.subr.bf16.mxu0 0
    %2592 = vmatpush1.bf16.msra.mxu0 %v1475
    %2593 = vmatprep.subr.bf16.mxu0 0
    %2594 = vmatpush1.bf16.msra.mxu0 %v1476
    %2595 = vmatprep.subr.bf16.mxu0 0
    %2596 = vmatpush1.bf16.msra.mxu0 %v1477
    %2597 = vmatprep.subr.bf16.mxu0 0
    %2598 = vmatpush1.bf16.msra.mxu0 %v1478
    %2599 = vmatprep.mubr.bf16.mxu0 %v2552
    %2600 = vmatmul.mubr.bf16.gmra.mrb[0].mxu0 %v2551
    %v2601 = vpop.f32.mrb[0].mxu0
    %v2602 = vadd.f32 0.0, %v2601
    %v2603 = vpop.f32.mrb[0].mxu0
    %v2604 = vpop.f32.mrb[0].mxu0
    %v2605 = vpop.f32.mrb[0].mxu0
    %2606 = vdwg.mxu0
    %2607 = vmatprep.subr.bf16.mxu0 0
    %2608 = vmatpush1.bf16.msra.mxu0 %v1479
    %2609 = vmatprep.subr.bf16.mxu0 0
    %2610 = vmatpush1.bf16.msra.mxu0 %v1480
    %2611 = vmatprep.subr.bf16.mxu0 0
    %2612 = vmatpush1.bf16.msra.mxu0 %v1481
    %2613 = vmatprep.subr.bf16.mxu0 0
    %2614 = vmatpush1.bf16.msra.mxu0 %v1482
    %2615 = vmatprep.subr.bf16.mxu0 0
    %2616 = vmatpush1.bf16.msra.mxu0 %v1483
    %2617 = vmatprep.subr.bf16.mxu0 0
    %2618 = vmatpush1.bf16.msra.mxu0 %v1484
    %2619 = vmatprep.subr.bf16.mxu0 0
    %2620 = vmatpush1.bf16.msra.mxu0 %v1485
    %2621 = vmatprep.subr.bf16.mxu0 0
    %2622 = vmatpush1.bf16.msra.mxu0 %v1486
    %2623 = vmatprep.subr.bf16.mxu0 0
    %2624 = vmatpush1.bf16.msra.mxu0 %v1487
    %2625 = vmatprep.subr.bf16.mxu0 0
    %2626 = vmatpush1.bf16.msra.mxu0 %v1488
    %2627 = vmatprep.subr.bf16.mxu0 0
    %2628 = vmatpush1.bf16.msra.mxu0 %v1489
    %2629 = vmatprep.subr.bf16.mxu0 0
    %2630 = vmatpush1.bf16.msra.mxu0 %v1490
    %2631 = vmatprep.subr.bf16.mxu0 0
    %2632 = vmatpush1.bf16.msra.mxu0 %v1491
    %2633 = vmatprep.subr.bf16.mxu0 0
    %2634 = vmatpush1.bf16.msra.mxu0 %v1492
    %2635 = vmatprep.subr.bf16.mxu0 0
    %2636 = vmatpush1.bf16.msra.mxu0 %v1493
    %2637 = vmatprep.subr.bf16.mxu0 0
    %2638 = vmatpush1.bf16.msra.mxu0 %v1494
    %2639 = vmatprep.mubr.bf16.mxu0 %v2554
    %2640 = vmatmul.mubr.bf16.gmra.mrb[0].mxu0 %v2553
    %v2641 = vpop.f32.mrb[0].mxu0
    %v2642 = vadd.f32 %v2602, %v2641
    %v2643 = vpop.f32.mrb[0].mxu0
    %v2644 = vpop.f32.mrb[0].mxu0
    %v2645 = vpop.f32.mrb[0].mxu0
    %2646 = vdwg.mxu0
    %2647 = vmatprep.subr.bf16.mxu0 0
    %2648 = vmatpush1.bf16.msra.mxu0 %v1495
    %2649 = vmatprep.subr.bf16.mxu0 0
    %2650 = vmatpush1.bf16.msra.mxu0 %v1496
    %2651 = vmatprep.subr.bf16.mxu0 0
    %2652 = vmatpush1.bf16.msra.mxu0 %v1497
    %2653 = vmatprep.subr.bf16.mxu0 0
    %2654 = vmatpush1.bf16.msra.mxu0 %v1498
    %2655 = vmatprep.subr.bf16.mxu0 0
    %2656 = vmatpush1.bf16.msra.mxu0 %v1499
    %2657 = vmatprep.subr.bf16.mxu0 0
    %2658 = vmatpush1.bf16.msra.mxu0 %v1500
    %2659 = vmatprep.subr.bf16.mxu0 0
    %2660 = vmatpush1.bf16.msra.mxu0 %v1501
    %2661 = vmatprep.subr.bf16.mxu0 0
    %2662 = vmatpush1.bf16.msra.mxu0 %v1502
    %2663 = vmatprep.subr.bf16.mxu0 0
    %2664 = vmatpush1.bf16.msra.mxu0 %v1503
    %2665 = vmatprep.subr.bf16.mxu0 0
    %2666 = vmatpush1.bf16.msra.mxu0 %v1504
    %2667 = vmatprep.subr.bf16.mxu0 0
    %2668 = vmatpush1.bf16.msra.mxu0 %v1505
    %2669 = vmatprep.subr.bf16.mxu0 0
    %2670 = vmatpush1.bf16.msra.mxu0 %v1506
    %2671 = vmatprep.subr.bf16.mxu0 0
    %2672 = vmatpush1.bf16.msra.mxu0 %v1507
    %2673 = vmatprep.subr.bf16.mxu0 0
    %2674 = vmatpush1.bf16.msra.mxu0 %v1508
    %2675 = vmatprep.subr.bf16.mxu0 0
    %2676 = vmatpush1.bf16.msra.mxu0 %v1509
    %2677 = vmatprep.subr.bf16.mxu0 0
    %2678 = vmatpush1.bf16.msra.mxu0 %v1510
    %2679 = vmatprep.mubr.bf16.mxu0 %v2556
    %2680 = vmatmul.mubr.bf16.gmra.mrb[0].mxu0 %v2555
    %v2681 = vpop.f32.mrb[0].mxu0
    %v2682 = vadd.f32 %v2642, %v2681
    %v2683 = vpop.f32.mrb[0].mxu0
    %v2684 = vpop.f32.mrb[0].mxu0
    %v2685 = vpop.f32.mrb[0].mxu0
    %2686 = vdwg.mxu0
    %2687 = vmatprep.subr.bf16.mxu0 0
    %2688 = vmatpush1.bf16.msra.mxu0 %v1511
    %2689 = vmatprep.subr.bf16.mxu0 0
    %2690 = vmatpush1.bf16.msra.mxu0 %v1512
    %2691 = vmatprep.subr.bf16.mxu0 0
    %2692 = vmatpush1.bf16.msra.mxu0 %v1513
    %2693 = vmatprep.subr.bf16.mxu0 0
    %2694 = vmatpush1.bf16.msra.mxu0 %v1514
    %2695 = vmatprep.subr.bf16.mxu0 0
    %2696 = vmatpush1.bf16.msra.mxu0 %v1515
    %2697 = vmatprep.subr.bf16.mxu0 0
    %2698 = vmatpush1.bf16.msra.mxu0 %v1516
    %2699 = vmatprep.subr.bf16.mxu0 0
    %2700 = vmatpush1.bf16.msra.mxu0 %v1517
    %2701 = vmatprep.subr.bf16.mxu0 0
    %2702 = vmatpush1.bf16.msra.mxu0 %v1518
    %2703 = vmatprep.subr.bf16.mxu0 0
    %2704 = vmatpush1.bf16.msra.mxu0 %v1519
    %2705 = vmatprep.subr.bf16.mxu0 0
    %2706 = vmatpush1.bf16.msra.mxu0 %v1520
    %2707 = vmatprep.subr.bf16.mxu0 0
    %2708 = vmatpush1.bf16.msra.mxu0 %v1521
    %2709 = vmatprep.subr.bf16.mxu0 0
    %2710 = vmatpush1.bf16.msra.mxu0 %v1522
    %2711 = vmatprep.subr.bf16.mxu0 0
    %2712 = vmatpush1.bf16.msra.mxu0 %v1523
    %2713 = vmatprep.subr.bf16.mxu0 0
    %2714 = vmatpush1.bf16.msra.mxu0 %v1524
    %2715 = vmatprep.subr.bf16.mxu0 0
    %2716 = vmatpush1.bf16.msra.mxu0 %v1525
    %2717 = vmatprep.subr.bf16.mxu0 0
    %2718 = vmatpush1.bf16.msra.mxu0 %v1526
    %2719 = vmatprep.mubr.bf16.mxu0 %v2558
    %2720 = vmatmul.mubr.bf16.gmra.mrb[0].mxu0 %v2557
    %v2721 = vpop.f32.mrb[0].mxu0
    %v2722 = vadd.f32 %v2682, %v2721
    %v2723 = vpop.f32.mrb[0].mxu0
    %v2724 = vpop.f32.mrb[0].mxu0
    %v2725 = vpop.f32.mrb[0].mxu0
    %2726 = vdwg.mxu0
    %2727 = vmatprep.subr.bf16.mxu0 0
    %2728 = vmatpush1.bf16.msra.mxu0 %v1527
    %2729 = vmatprep.subr.bf16.mxu0 0
    %2730 = vmatpush1.bf16.msra.mxu0 %v1528
    %2731 = vmatprep.subr.bf16.mxu0 0
    %2732 = vmatpush1.bf16.msra.mxu0 %v1529
    %2733 = vmatprep.subr.bf16.mxu0 0
    %2734 = vmatpush1.bf16.msra.mxu0 %v1530
    %2735 = vmatprep.subr.bf16.mxu0 0
    %2736 = vmatpush1.bf16.msra.mxu0 %v1531
    %2737 = vmatprep.subr.bf16.mxu0 0
    %2738 = vmatpush1.bf16.msra.mxu0 %v1532
    %2739 = vmatprep.subr.bf16.mxu0 0
    %2740 = vmatpush1.bf16.msra.mxu0 %v1533
    %2741 = vmatprep.subr.bf16.mxu0 0
    %2742 = vmatpush1.bf16.msra.mxu0 %v1534
    %2743 = vmatprep.subr.bf16.mxu0 0
    %2744 = vmatpush1.bf16.msra.mxu0 %v1535
    %2745 = vmatprep.subr.bf16.mxu0 0
    %2746 = vmatpush1.bf16.msra.mxu0 %v1536
    %2747 = vmatprep.subr.bf16.mxu0 0
    %2748 = vmatpush1.bf16.msra.mxu0 %v1537
    %2749 = vmatprep.subr.bf16.mxu0 0
    %2750 = vmatpush1.bf16.msra.mxu0 %v1538
    %2751 = vmatprep.subr.bf16.mxu0 0
    %2752 = vmatpush1.bf16.msra.mxu0 %v1539
    %2753 = vmatprep.subr.bf16.mxu0 0
    %2754 = vmatpush1.bf16.msra.mxu0 %v1540
    %2755 = vmatprep.subr.bf16.mxu0 0
    %2756 = vmatpush1.bf16.msra.mxu0 %v1541
    %2757 = vmatprep.subr.bf16.mxu0 0
    %2758 = vmatpush1.bf16.msra.mxu0 %v1542
    %2759 = vmatprep.mubr.bf16.mxu0 %v2560
    %2760 = vmatmul.mubr.bf16.gmra.mrb[0].mxu0 %v2559
    %v2761 = vpop.f32.mrb[0].mxu0
    %v2762 = vadd.f32 %v2722, %v2761
    %v2763 = vpop.f32.mrb[0].mxu0
    %v2764 = vpop.f32.mrb[0].mxu0
    %v2765 = vpop.f32.mrb[0].mxu0
    %2766 = vdwg.mxu0
    %2767 = vmatprep.subr.bf16.mxu0 0
    %2768 = vmatpush1.bf16.msra.mxu0 %v1543
    %2769 = vmatprep.subr.bf16.mxu0 0
    %2770 = vmatpush1.bf16.msra.mxu0 %v1544
    %2771 = vmatprep.subr.bf16.mxu0 0
    %2772 = vmatpush1.bf16.msra.mxu0 %v1545
    %2773 = vmatprep.subr.bf16.mxu0 0
    %2774 = vmatpush1.bf16.msra.mxu0 %v1546
    %2775 = vmatprep.subr.bf16.mxu0 0
    %2776 = vmatpush1.bf16.msra.mxu0 %v1547
    %2777 = vmatprep.subr.bf16.mxu0 0
    %2778 = vmatpush1.bf16.msra.mxu0 %v1548
    %2779 = vmatprep.subr.bf16.mxu0 0
    %2780 = vmatpush1.bf16.msra.mxu0 %v1549
    %2781 = vmatprep.subr.bf16.mxu0 0
    %2782 = vmatpush1.bf16.msra.mxu0 %v1550
    %2783 = vmatprep.subr.bf16.mxu0 0
    %2784 = vmatpush1.bf16.msra.mxu0 %v1551
    %2785 = vmatprep.subr.bf16.mxu0 0
    %2786 = vmatpush1.bf16.msra.mxu0 %v1552
    %2787 = vmatprep.subr.bf16.mxu0 0
    %2788 = vmatpush1.bf16.msra.mxu0 %v1553
    %2789 = vmatprep.subr.bf16.mxu0 0
    %2790 = vmatpush1.bf16.msra.mxu0 %v1554
    %2791 = vmatprep.subr.bf16.mxu0 0
    %2792 = vmatpush1.bf16.msra.mxu0 %v1555
    %2793 = vmatprep.subr.bf16.mxu0 0
    %2794 = vmatpush1.bf16.msra.mxu0 %v1556
    %2795 = vmatprep.subr.bf16.mxu0 0
    %2796 = vmatpush1.bf16.msra.mxu0 %v1557
    %2797 = vmatprep.subr.bf16.mxu0 0
    %2798 = vmatpush1.bf16.msra.mxu0 %v1558
    %2799 = vmatprep.mubr.bf16.mxu0 %v2562
    %2800 = vmatmul.mubr.bf16.gmra.mrb[0].mxu0 %v2561
    %v2801 = vpop.f32.mrb[0].mxu0
    %v2802 = vadd.f32 %v2762, %v2801
    %v2803 = vpop.f32.mrb[0].mxu0
    %v2804 = vpop.f32.mrb[0].mxu0
    %v2805 = vpop.f32.mrb[0].mxu0
    %2806 = vdwg.mxu0
    %2807 = vmatprep.subr.bf16.mxu0 0
    %2808 = vmatpush1.bf16.msra.mxu0 %v1559
    %2809 = vmatprep.subr.bf16.mxu0 0
    %2810 = vmatpush1.bf16.msra.mxu0 %v1560
    %2811 = vmatprep.subr.bf16.mxu0 0
    %2812 = vmatpush1.bf16.msra.mxu0 %v1561
    %2813 = vmatprep.subr.bf16.mxu0 0
    %2814 = vmatpush1.bf16.msra.mxu0 %v1562
    %2815 = vmatprep.subr.bf16.mxu0 0
    %2816 = vmatpush1.bf16.msra.mxu0 %v1563
    %2817 = vmatprep.subr.bf16.mxu0 0
    %2818 = vmatpush1.bf16.msra.mxu0 %v1564
    %2819 = vmatprep.subr.bf16.mxu0 0
    %2820 = vmatpush1.bf16.msra.mxu0 %v1565
    %2821 = vmatprep.subr.bf16.mxu0 0
    %2822 = vmatpush1.bf16.msra.mxu0 %v1566
    %2823 = vmatprep.subr.bf16.mxu0 0
    %2824 = vmatpush1.bf16.msra.mxu0 %v1567
    %2825 = vmatprep.subr.bf16.mxu0 0
    %2826 = vmatpush1.bf16.msra.mxu0 %v1568
    %2827 = vmatprep.subr.bf16.mxu0 0
    %2828 = vmatpush1.bf16.msra.mxu0 %v1569
    %2829 = vmatprep.subr.bf16.mxu0 0
    %2830 = vmatpush1.bf16.msra.mxu0 %v1570
    %2831 = vmatprep.subr.bf16.mxu0 0
    %2832 = vmatpush1.bf16.msra.mxu0 %v1571
    %2833 = vmatprep.subr.bf16.mxu0 0
    %2834 = vmatpush1.bf16.msra.mxu0 %v1572
    %2835 = vmatprep.subr.bf16.mxu0 0
    %2836 = vmatpush1.bf16.msra.mxu0 %v1573
    %2837 = vmatprep.subr.bf16.mxu0 0
    %2838 = vmatpush1.bf16.msra.mxu0 %v1574
    %2839 = vmatprep.mubr.bf16.mxu0 %v2564
    %2840 = vmatmul.mubr.bf16.gmra.mrb[0].mxu0 %v2563
    %v2841 = vpop.f32.mrb[0].mxu0
    %v2842 = vadd.f32 %v2802, %v2841
    %v2843 = vpop.f32.mrb[0].mxu0
    %v2844 = vpop.f32.mrb[0].mxu0
    %v2845 = vpop.f32.mrb[0].mxu0
    %2846 = vdwg.mxu0
    %2847 = vmatprep.subr.bf16.mxu0 0
    %2848 = vmatpush1.bf16.msra.mxu0 %v1575
    %2849 = vmatprep.subr.bf16.mxu0 0
    %2850 = vmatpush1.bf16.msra.mxu0 %v1576
    %2851 = vmatprep.subr.bf16.mxu0 0
    %2852 = vmatpush1.bf16.msra.mxu0 %v1577
    %2853 = vmatprep.subr.bf16.mxu0 0
    %2854 = vmatpush1.bf16.msra.mxu0 %v1578
    %2855 = vmatprep.subr.bf16.mxu0 0
    %2856 = vmatpush1.bf16.msra.mxu0 %v1579
    %2857 = vmatprep.subr.bf16.mxu0 0
    %2858 = vmatpush1.bf16.msra.mxu0 %v1580
    %2859 = vmatprep.subr.bf16.mxu0 0
    %2860 = vmatpush1.bf16.msra.mxu0 %v1581
    %2861 = vmatprep.subr.bf16.mxu0 0
    %2862 = vmatpush1.bf16.msra.mxu0 %v1582
    %2863 = vmatprep.subr.bf16.mxu0 0
    %2864 = vmatpush1.bf16.msra.mxu0 %v1583
    %2865 = vmatprep.subr.bf16.mxu0 0
    %2866 = vmatpush1.bf16.msra.mxu0 %v1584
    %2867 = vmatprep.subr.bf16.mxu0 0
    %2868 = vmatpush1.bf16.msra.mxu0 %v1585
    %2869 = vmatprep.subr.bf16.mxu0 0
    %2870 = vmatpush1.bf16.msra.mxu0 %v1586
    %2871 = vmatprep.subr.bf16.mxu0 0
    %2872 = vmatpush1.bf16.msra.mxu0 %v1587
    %2873 = vmatprep.subr.bf16.mxu0 0
    %2874 = vmatpush1.bf16.msra.mxu0 %v1588
    %2875 = vmatprep.subr.bf16.mxu0 0
    %2876 = vmatpush1.bf16.msra.mxu0 %v1589
    %2877 = vmatprep.subr.bf16.mxu0 0
    %2878 = vmatpush1.bf16.msra.mxu0 %v1590
    %2879 = vmatprep.mubr.bf16.mxu0 %v2566
    %2880 = vmatmul.mubr.bf16.gmra.mrb[0].mxu0 %v2565
    %v2881 = vpop.f32.mrb[0].mxu0
    %v2882 = vadd.f32 %v2842, %v2881
    %v2883 = vpop.f32.mrb[0].mxu0
    %v2884 = vpop.f32.mrb[0].mxu0
    %v2885 = vpop.f32.mrb[0].mxu0
    %2886 = vdwg.mxu0
    %2887 = vmatprep.subr.bf16.mxu0 0
    %2888 = vmatpush1.bf16.msra.mxu0 %v1463
    %2889 = vmatprep.subr.bf16.mxu0 0
    %2890 = vmatpush1.bf16.msra.mxu0 %v1464
    %2891 = vmatprep.subr.bf16.mxu0 0
    %2892 = vmatpush1.bf16.msra.mxu0 %v1465
    %2893 = vmatprep.subr.bf16.mxu0 0
    %2894 = vmatpush1.bf16.msra.mxu0 %v1466
    %2895 = vmatprep.subr.bf16.mxu0 0
    %2896 = vmatpush1.bf16.msra.mxu0 %v1467
    %2897 = vmatprep.subr.bf16.mxu0 0
    %2898 = vmatpush1.bf16.msra.mxu0 %v1468
    %2899 = vmatprep.subr.bf16.mxu0 0
    %2900 = vmatpush1.bf16.msra.mxu0 %v1469
    %2901 = vmatprep.subr.bf16.mxu0 0
    %2902 = vmatpush1.bf16.msra.mxu0 %v1470
    %2903 = vmatprep.subr.bf16.mxu0 0
    %2904 = vmatpush1.bf16.msra.mxu0 %v1471
    %2905 = vmatprep.subr.bf16.mxu0 0
    %2906 = vmatpush1.bf16.msra.mxu0 %v1472
    %2907 = vmatprep.subr.bf16.mxu0 0
    %2908 = vmatpush1.bf16.msra.mxu0 %v1473
    %2909 = vmatprep.subr.bf16.mxu0 0
    %2910 = vmatpush1.bf16.msra.mxu0 %v1474
    %2911 = vmatprep.subr.bf16.mxu0 0
    %2912 = vmatpush1.bf16.msra.mxu0 %v1475
    %2913 = vmatprep.subr.bf16.mxu0 0
    %2914 = vmatpush1.bf16.msra.mxu0 %v1476
    %2915 = vmatprep.subr.bf16.mxu0 0
    %2916 = vmatpush1.bf16.msra.mxu0 %v1477
    %2917 = vmatprep.subr.bf16.mxu0 0
    %2918 = vmatpush1.bf16.msra.mxu0 %v1478
    %2919 = vmatprep.mubr.bf16.mxu0 %v1896
    %2920 = vmatmul.mubr.bf16.gmra.mrb[0].mxu0 %v1895
    %v2921 = vpop.f32.mrb[0].mxu0
    %v2922 = vadd.f32 %v2882, %v2921
    %v2923 = vpop.f32.mrb[0].mxu0
    %v2924 = vpop.f32.mrb[0].mxu0
    %v2925 = vpop.f32.mrb[0].mxu0
    %2926 = vdwg.mxu0
    %2927 = vmatprep.subr.bf16.mxu0 0
    %2928 = vmatpush1.bf16.msra.mxu0 %v1479
    %2929 = vmatprep.subr.bf16.mxu0 0
    %2930 = vmatpush1.bf16.msra.mxu0 %v1480
    %2931 = vmatprep.subr.bf16.mxu0 0
    %2932 = vmatpush1.bf16.msra.mxu0 %v1481
    %2933 = vmatprep.subr.bf16.mxu0 0
    %2934 = vmatpush1.bf16.msra.mxu0 %v1482
    %2935 = vmatprep.subr.bf16.mxu0 0
    %2936 = vmatpush1.bf16.msra.mxu0 %v1483
    %2937 = vmatprep.subr.bf16.mxu0 0
    %2938 = vmatpush1.bf16.msra.mxu0 %v1484
    %2939 = vmatprep.subr.bf16.mxu0 0
    %2940 = vmatpush1.bf16.msra.mxu0 %v1485
    %2941 = vmatprep.subr.bf16.mxu0 0
    %2942 = vmatpush1.bf16.msra.mxu0 %v1486
    %2943 = vmatprep.subr.bf16.mxu0 0
    %2944 = vmatpush1.bf16.msra.mxu0 %v1487
    %2945 = vmatprep.subr.bf16.mxu0 0
    %2946 = vmatpush1.bf16.msra.mxu0 %v1488
    %2947 = vmatprep.subr.bf16.mxu0 0
    %2948 = vmatpush1.bf16.msra.mxu0 %v1489
    %2949 = vmatprep.subr.bf16.mxu0 0
    %2950 = vmatpush1.bf16.msra.mxu0 %v1490
    %2951 = vmatprep.subr.bf16.mxu0 0
    %2952 = vmatpush1.bf16.msra.mxu0 %v1491
    %2953 = vmatprep.subr.bf16.mxu0 0
    %2954 = vmatpush1.bf16.msra.mxu0 %v1492
    %2955 = vmatprep.subr.bf16.mxu0 0
    %2956 = vmatpush1.bf16.msra.mxu0 %v1493
    %2957 = vmatprep.subr.bf16.mxu0 0
    %2958 = vmatpush1.bf16.msra.mxu0 %v1494
    %2959 = vmatprep.mubr.bf16.mxu0 %v1898
    %2960 = vmatmul.mubr.bf16.gmra.mrb[0].mxu0 %v1897
    %v2961 = vpop.f32.mrb[0].mxu0
    %v2962 = vadd.f32 %v2922, %v2961
    %v2963 = vpop.f32.mrb[0].mxu0
    %v2964 = vpop.f32.mrb[0].mxu0
    %v2965 = vpop.f32.mrb[0].mxu0
    %2966 = vdwg.mxu0
    %2967 = vmatprep.subr.bf16.mxu0 0
    %2968 = vmatpush1.bf16.msra.mxu0 %v1495
    %2969 = vmatprep.subr.bf16.mxu0 0
    %2970 = vmatpush1.bf16.msra.mxu0 %v1496
    %2971 = vmatprep.subr.bf16.mxu0 0
    %2972 = vmatpush1.bf16.msra.mxu0 %v1497
    %2973 = vmatprep.subr.bf16.mxu0 0
    %2974 = vmatpush1.bf16.msra.mxu0 %v1498
    %2975 = vmatprep.subr.bf16.mxu0 0
    %2976 = vmatpush1.bf16.msra.mxu0 %v1499
    %2977 = vmatprep.subr.bf16.mxu0 0
    %2978 = vmatpush1.bf16.msra.mxu0 %v1500
    %2979 = vmatprep.subr.bf16.mxu0 0
    %2980 = vmatpush1.bf16.msra.mxu0 %v1501
    %2981 = vmatprep.subr.bf16.mxu0 0
    %2982 = vmatpush1.bf16.msra.mxu0 %v1502
    %2983 = vmatprep.subr.bf16.mxu0 0
    %2984 = vmatpush1.bf16.msra.mxu0 %v1503
    %2985 = vmatprep.subr.bf16.mxu0 0
    %2986 = vmatpush1.bf16.msra.mxu0 %v1504
    %2987 = vmatprep.subr.bf16.mxu0 0
    %2988 = vmatpush1.bf16.msra.mxu0 %v1505
    %2989 = vmatprep.subr.bf16.mxu0 0
    %2990 = vmatpush1.bf16.msra.mxu0 %v1506
    %2991 = vmatprep.subr.bf16.mxu0 0
    %2992 = vmatpush1.bf16.msra.mxu0 %v1507
    %2993 = vmatprep.subr.bf16.mxu0 0
    %2994 = vmatpush1.bf16.msra.mxu0 %v1508
    %2995 = vmatprep.subr.bf16.mxu0 0
    %2996 = vmatpush1.bf16.msra.mxu0 %v1509
    %2997 = vmatprep.subr.bf16.mxu0 0
    %2998 = vmatpush1.bf16.msra.mxu0 %v1510
    %2999 = vmatprep.mubr.bf16.mxu0 %v1900
    %3000 = vmatmul.mubr.bf16.gmra.mrb[0].mxu0 %v1899
    %v3001 = vpop.f32.mrb[0].mxu0
    %v3002 = vadd.f32 %v2962, %v3001
    %v3003 = vpop.f32.mrb[0].mxu0
    %v3004 = vpop.f32.mrb[0].mxu0
    %v3005 = vpop.f32.mrb[0].mxu0
    %3006 = vdwg.mxu0
    %3007 = vmatprep.subr.bf16.mxu0 0
    %3008 = vmatpush1.bf16.msra.mxu0 %v1511
    %3009 = vmatprep.subr.bf16.mxu0 0
    %3010 = vmatpush1.bf16.msra.mxu0 %v1512
    %3011 = vmatprep.subr.bf16.mxu0 0
    %3012 = vmatpush1.bf16.msra.mxu0 %v1513
    %3013 = vmatprep.subr.bf16.mxu0 0
    %3014 = vmatpush1.bf16.msra.mxu0 %v1514
    %3015 = vmatprep.subr.bf16.mxu0 0
    %3016 = vmatpush1.bf16.msra.mxu0 %v1515
    %3017 = vmatprep.subr.bf16.mxu0 0
    %3018 = vmatpush1.bf16.msra.mxu0 %v1516
    %3019 = vmatprep.subr.bf16.mxu0 0
    %3020 = vmatpush1.bf16.msra.mxu0 %v1517
    %3021 = vmatprep.subr.bf16.mxu0 0
    %3022 = vmatpush1.bf16.msra.mxu0 %v1518
    %3023 = vmatprep.subr.bf16.mxu0 0
    %3024 = vmatpush1.bf16.msra.mxu0 %v1519
    %3025 = vmatprep.subr.bf16.mxu0 0
    %3026 = vmatpush1.bf16.msra.mxu0 %v1520
    %3027 = vmatprep.subr.bf16.mxu0 0
    %3028 = vmatpush1.bf16.msra.mxu0 %v1521
    %3029 = vmatprep.subr.bf16.mxu0 0
    %3030 = vmatpush1.bf16.msra.mxu0 %v1522
    %3031 = vmatprep.subr.bf16.mxu0 0
    %3032 = vmatpush1.bf16.msra.mxu0 %v1523
    %3033 = vmatprep.subr.bf16.mxu0 0
    %3034 = vmatpush1.bf16.msra.mxu0 %v1524
    %3035 = vmatprep.subr.bf16.mxu0 0
    %3036 = vmatpush1.bf16.msra.mxu0 %v1525
    %3037 = vmatprep.subr.bf16.mxu0 0
    %3038 = vmatpush1.bf16.msra.mxu0 %v1526
    %3039 = vmatprep.mubr.bf16.mxu0 %v1902
    %3040 = vmatmul.mubr.bf16.gmra.mrb[0].mxu0 %v1901
    %v3041 = vpop.f32.mrb[0].mxu0
    %v3042 = vadd.f32 %v3002, %v3041
    %v3043 = vpop.f32.mrb[0].mxu0
    %v3044 = vpop.f32.mrb[0].mxu0
    %v3045 = vpop.f32.mrb[0].mxu0
    %3046 = vdwg.mxu0
    %3047 = vmatprep.subr.bf16.mxu0 0
    %3048 = vmatpush1.bf16.msra.mxu0 %v1527
    %3049 = vmatprep.subr.bf16.mxu0 0
    %3050 = vmatpush1.bf16.msra.mxu0 %v1528
    %3051 = vmatprep.subr.bf16.mxu0 0
    %3052 = vmatpush1.bf16.msra.mxu0 %v1529
    %3053 = vmatprep.subr.bf16.mxu0 0
    %3054 = vmatpush1.bf16.msra.mxu0 %v1530
    %3055 = vmatprep.subr.bf16.mxu0 0
    %3056 = vmatpush1.bf16.msra.mxu0 %v1531
    %3057 = vmatprep.subr.bf16.mxu0 0
    %3058 = vmatpush1.bf16.msra.mxu0 %v1532
    %3059 = vmatprep.subr.bf16.mxu0 0
    %3060 = vmatpush1.bf16.msra.mxu0 %v1533
    %3061 = vmatprep.subr.bf16.mxu0 0
    %3062 = vmatpush1.bf16.msra.mxu0 %v1534
    %3063 = vmatprep.subr.bf16.mxu0 0
    %3064 = vmatpush1.bf16.msra.mxu0 %v1535
    %3065 = vmatprep.subr.bf16.mxu0 0
    %3066 = vmatpush1.bf16.msra.mxu0 %v1536
    %3067 = vmatprep.subr.bf16.mxu0 0
    %3068 = vmatpush1.bf16.msra.mxu0 %v1537
    %3069 = vmatprep.subr.bf16.mxu0 0
    %3070 = vmatpush1.bf16.msra.mxu0 %v1538
    %3071 = vmatprep.subr.bf16.mxu0 0
    %3072 = vmatpush1.bf16.msra.mxu0 %v1539
    %3073 = vmatprep.subr.bf16.mxu0 0
    %3074 = vmatpush1.bf16.msra.mxu0 %v1540
    %3075 = vmatprep.subr.bf16.mxu0 0
    %3076 = vmatpush1.bf16.msra.mxu0 %v1541
    %3077 = vmatprep.subr.bf16.mxu0 0
    %3078 = vmatpush1.bf16.msra.mxu0 %v1542
    %3079 = vmatprep.mubr.bf16.mxu0 %v1904
    %3080 = vmatmul.mubr.bf16.gmra.mrb[0].mxu0 %v1903
    %v3081 = vpop.f32.mrb[0].mxu0
    %v3082 = vadd.f32 %v3042, %v3081
    %v3083 = vpop.f32.mrb[0].mxu0
    %v3084 = vpop.f32.mrb[0].mxu0
    %v3085 = vpop.f32.mrb[0].mxu0
    %3086 = vdwg.mxu0
    %3087 = vmatprep.subr.bf16.mxu0 0
    %3088 = vmatpush1.bf16.msra.mxu0 %v1543
    %3089 = vmatprep.subr.bf16.mxu0 0
    %3090 = vmatpush1.bf16.msra.mxu0 %v1544
    %3091 = vmatprep.subr.bf16.mxu0 0
    %3092 = vmatpush1.bf16.msra.mxu0 %v1545
    %3093 = vmatprep.subr.bf16.mxu0 0
    %3094 = vmatpush1.bf16.msra.mxu0 %v1546
    %3095 = vmatprep.subr.bf16.mxu0 0
    %3096 = vmatpush1.bf16.msra.mxu0 %v1547
    %3097 = vmatprep.subr.bf16.mxu0 0
    %3098 = vmatpush1.bf16.msra.mxu0 %v1548
    %3099 = vmatprep.subr.bf16.mxu0 0
    %3100 = vmatpush1.bf16.msra.mxu0 %v1549
    %3101 = vmatprep.subr.bf16.mxu0 0
    %3102 = vmatpush1.bf16.msra.mxu0 %v1550
    %3103 = vmatprep.subr.bf16.mxu0 0
    %3104 = vmatpush1.bf16.msra.mxu0 %v1551
    %3105 = vmatprep.subr.bf16.mxu0 0
    %3106 = vmatpush1.bf16.msra.mxu0 %v1552
    %3107 = vmatprep.subr.bf16.mxu0 0
    %3108 = vmatpush1.bf16.msra.mxu0 %v1553
    %3109 = vmatprep.subr.bf16.mxu0 0
    %3110 = vmatpush1.bf16.msra.mxu0 %v1554
    %3111 = vmatprep.subr.bf16.mxu0 0
    %3112 = vmatpush1.bf16.msra.mxu0 %v1555
    %3113 = vmatprep.subr.bf16.mxu0 0
    %3114 = vmatpush1.bf16.msra.mxu0 %v1556
    %3115 = vmatprep.subr.bf16.mxu0 0
    %3116 = vmatpush1.bf16.msra.mxu0 %v1557
    %3117 = vmatprep.subr.bf16.mxu0 0
    %3118 = vmatpush1.bf16.msra.mxu0 %v1558
    %3119 = vmatprep.mubr.bf16.mxu0 %v1906
    %3120 = vmatmul.mubr.bf16.gmra.mrb[0].mxu0 %v1905
    %v3121 = vpop.f32.mrb[0].mxu0
    %v3122 = vadd.f32 %v3082, %v3121
    %v3123 = vpop.f32.mrb[0].mxu0
    %v3124 = vpop.f32.mrb[0].mxu0
    %v3125 = vpop.f32.mrb[0].mxu0
    %3126 = vdwg.mxu0
    %3127 = vmatprep.subr.bf16.mxu0 0
    %3128 = vmatpush1.bf16.msra.mxu0 %v1559
    %3129 = vmatprep.subr.bf16.mxu0 0
    %3130 = vmatpush1.bf16.msra.mxu0 %v1560
    %3131 = vmatprep.subr.bf16.mxu0 0
    %3132 = vmatpush1.bf16.msra.mxu0 %v1561
    %3133 = vmatprep.subr.bf16.mxu0 0
    %3134 = vmatpush1.bf16.msra.mxu0 %v1562
    %3135 = vmatprep.subr.bf16.mxu0 0
    %3136 = vmatpush1.bf16.msra.mxu0 %v1563
    %3137 = vmatprep.subr.bf16.mxu0 0
    %3138 = vmatpush1.bf16.msra.mxu0 %v1564
    %3139 = vmatprep.subr.bf16.mxu0 0
    %3140 = vmatpush1.bf16.msra.mxu0 %v1565
    %3141 = vmatprep.subr.bf16.mxu0 0
    %3142 = vmatpush1.bf16.msra.mxu0 %v1566
    %3143 = vmatprep.subr.bf16.mxu0 0
    %3144 = vmatpush1.bf16.msra.mxu0 %v1567
    %3145 = vmatprep.subr.bf16.mxu0 0
    %3146 = vmatpush1.bf16.msra.mxu0 %v1568
    %3147 = vmatprep.subr.bf16.mxu0 0
    %3148 = vmatpush1.bf16.msra.mxu0 %v1569
    %3149 = vmatprep.subr.bf16.mxu0 0
    %3150 = vmatpush1.bf16.msra.mxu0 %v1570
    %3151 = vmatprep.subr.bf16.mxu0 0
    %3152 = vmatpush1.bf16.msra.mxu0 %v1571
    %3153 = vmatprep.subr.bf16.mxu0 0
    %3154 = vmatpush1.bf16.msra.mxu0 %v1572
    %3155 = vmatprep.subr.bf16.mxu0 0
    %3156 = vmatpush1.bf16.msra.mxu0 %v1573
    %3157 = vmatprep.subr.bf16.mxu0 0
    %3158 = vmatpush1.bf16.msra.mxu0 %v1574
    %3159 = vmatprep.mubr.bf16.mxu0 %v1908
    %3160 = vmatmul.mubr.bf16.gmra.mrb[0].mxu0 %v1907
    %v3161 = vpop.f32.mrb[0].mxu0
    %v3162 = vadd.f32 %v3122, %v3161
    %v3163 = vpop.f32.mrb[0].mxu0
    %v3164 = vpop.f32.mrb[0].mxu0
    %v3165 = vpop.f32.mrb[0].mxu0
    %3166 = vdwg.mxu0
    %3167 = vmatprep.subr.bf16.mxu0 0
    %3168 = vmatpush1.bf16.msra.mxu0 %v1575
    %3169 = vmatprep.subr.bf16.mxu0 0
    %3170 = vmatpush1.bf16.msra.mxu0 %v1576
    %3171 = vmatprep.subr.bf16.mxu0 0
    %3172 = vmatpush1.bf16.msra.mxu0 %v1577
    %3173 = vmatprep.subr.bf16.mxu0 0
    %3174 = vmatpush1.bf16.msra.mxu0 %v1578
    %3175 = vmatprep.subr.bf16.mxu0 0
    %3176 = vmatpush1.bf16.msra.mxu0 %v1579
    %3177 = vmatprep.subr.bf16.mxu0 0
    %3178 = vmatpush1.bf16.msra.mxu0 %v1580
    %3179 = vmatprep.subr.bf16.mxu0 0
    %3180 = vmatpush1.bf16.msra.mxu0 %v1581
    %3181 = vmatprep.subr.bf16.mxu0 0
    %3182 = vmatpush1.bf16.msra.mxu0 %v1582
    %3183 = vmatprep.subr.bf16.mxu0 0
    %3184 = vmatpush1.bf16.msra.mxu0 %v1583
    %3185 = vmatprep.subr.bf16.mxu0 0
    %3186 = vmatpush1.bf16.msra.mxu0 %v1584
    %3187 = vmatprep.subr.bf16.mxu0 0
    %3188 = vmatpush1.bf16.msra.mxu0 %v1585
    %3189 = vmatprep.subr.bf16.mxu0 0
    %3190 = vmatpush1.bf16.msra.mxu0 %v1586
    %3191 = vmatprep.subr.bf16.mxu0 0
    %3192 = vmatpush1.bf16.msra.mxu0 %v1587
    %3193 = vmatprep.subr.bf16.mxu0 0
    %3194 = vmatpush1.bf16.msra.mxu0 %v1588
    %3195 = vmatprep.subr.bf16.mxu0 0
    %3196 = vmatpush1.bf16.msra.mxu0 %v1589
    %3197 = vmatprep.subr.bf16.mxu0 0
    %3198 = vmatpush1.bf16.msra.mxu0 %v1590
    %3199 = vmatprep.mubr.bf16.mxu0 %v1910
    %3200 = vmatmul.mubr.bf16.gmra.mrb[0].mxu0 %v1909
    %v3201 = vpop.f32.mrb[0].mxu0
    %v3202 = vadd.f32 %v3162, %v3201
    %v3203 = vpop.f32.mrb[0].mxu0
    %v3204 = vpop.f32.mrb[0].mxu0
    %v3205 = vpop.f32.mrb[0].mxu0
    %3206 = vdwg.mxu0
    %v3207 = vmul.f32 %v3202, 0.00390625
    %v3208 = vlog2.pop %v3207
    %v3209 = vmul.f32 %v3208, 0.6931472
    %v3210 = vstv %s31
    %v3211 = vmul.f32 %v3209, %v3210
    %v3212 = vmul.f32 %v3211, 1.442695
    %v3213 = vpow.pop %v3212
    %vm3214 = vcmask 64512
    %3215 = vst.msk [vmem:[#allocation6] sm:$0xff] %vm3214, %v3213
    // Predicated region
    $region14: #{tpu_custom_call.1} parent=1 // pred_check
      _
    $region15: #{tpu_custom_call.1} parent=1 // pred_check_branch
      %3217 = sbr.rel (0) target = $region17
    $region16: #{tpu_custom_call.1} parent=1 // pred_region
      %s3219 = ssub.s32 128, 128
      %3220 = vsyncadd [#allocation5], %s3219
      %s3222 = sshll.u32 [#allocation6], 4
      %s3223 = int_to_ptr.vmem [resolvable:$true] %s3222
      %3225 = dma.vmem_to_hbm [thread:$0]  %s3223, 128, %s2, [#allocation5]
    $region17: #{tpu_custom_call.1} parent=1 // pred_fallthru
      _
    // Predicated region
    $region18: #{tpu_custom_call.1} parent=1 // pred_check
      _
    $region19: #{tpu_custom_call.1} parent=1 // pred_check_branch
      %3227 = sbr.rel (0) target = $region21
    $region20: #{tpu_custom_call.1} parent=1 // pred_region
      %3228 = dma.done [#allocation5], 128
    $region21: #{tpu_custom_call.1} parent=1 // pred_fallthru
      _
    %3229 = vsyncpa [#allocation4], 1
    %3230 = vsyncpa [#allocation5], 1

</llo_original>
